<compile_context>
chip_gen: v5e
topology: v5e:2x2
jax: 0.10.0
libtpu: 0.0.40
codegen_flags: <defaults>
</compile_context>

<pallas_src>
import math

import jax
import jax.numpy as jnp
from jax import lax
from jax.experimental import pallas as pl
from jax.experimental.pallas import tpu as pltpu

# ---- TransAm demo configuration (small, lane-friendly, consistent w/ forward) --
S = 8                    # sequence length (len(src))
N = 2                    # stackNum: batch dim of src; decoder in = stackNum * d_model
D = 128                  # feature_size (d_model)
NH = 2                   # nhead
HD = D // NH             # head_dim = 64
HP = 128                 # padded head width (full lane tile)
FF = 256                 # dim_feedforward_num
H1, H2 = 256, 128        # hidden_layers
LN_EPS = 1e-5
LEAKY_SLOPE = 1.0        # nn.LeakyReLU(True) -> negative_slope = 1.0 (identity)
MAX_LEN = 64             # positional-encoding table length (>= S)


# ---- Pallas kernel: whole TransAm forward pass ---------------------------------
def transam_kernel(x_ref, pe_ref,
                   wqkv_ref, bqkv_ref, wo_ref, bo_ref,
                   g1_ref, b1_ref,
                   wff1_ref, bff1_ref, wff2_ref, bff2_ref,
                   g2_ref, b2_ref,
                   wdec_ref, bdec_ref,
                   out_ref):
    f32 = jnp.float32

    def layer_norm(x, g, b):
        mu = jnp.mean(x, axis=-1, keepdims=True)
        xc = x - mu
        var = jnp.mean(xc * xc, axis=-1, keepdims=True)
        return xc * lax.rsqrt(var + LN_EPS) * g + b

    # positional encoding (pe pre-tiled to batch-major rows at prep time)
    h = x_ref[...] + pe_ref[...]                                     # (N*S, D)

    # ---- multi-head self-attention -------------------------------------------
    # Fused QKV projection in padded-head layout: each head's q/k/v occupies its
    # own 128-lane block (64 real + 64 zero columns), so every slice below is an
    # aligned (S,128) tile.  The 1/sqrt(HD) query scale is folded into wqkv.
    qkv = jnp.dot(h, wqkv_ref[...], preferred_element_type=f32) + bqkv_ref[...]

    row = lax.broadcasted_iota(jnp.int32, (S, S), 0)
    col = lax.broadcasted_iota(jnp.int32, (S, S), 1)
    causal = col <= row                                              # j <= i allowed

    per_batch = []
    for n in range(N):                       # N*NH = 4 tiny, statically unrolled
        r0 = n * S
        heads = []
        for hh in range(NH):
            q0 = (0 * NH + hh) * HP
            k0 = (1 * NH + hh) * HP
            v0 = (2 * NH + hh) * HP
            qs = qkv[r0:r0 + S, q0:q0 + HP]                          # (S, 128)
            ks = qkv[r0:r0 + S, k0:k0 + HP]                          # (S, 128)
            vs = qkv[r0:r0 + S, v0:v0 + HP]                          # (S, 128)
            logits = lax.dot_general(qs, ks, (((1,), (1,)), ((), ())),
                                     preferred_element_type=f32)     # (S, S)
            logits = jnp.where(causal, logits, -1e30)
            logits = logits - jnp.max(logits, axis=-1, keepdims=True)
            p = jnp.exp(logits)
            denom = jnp.sum(p, axis=-1, keepdims=True)
            p = p * pl.reciprocal(denom, approx=True)                # EUP slot
            heads.append(jnp.dot(p, vs, preferred_element_type=f32))  # (S, 128)
        per_batch.append(jnp.concatenate(heads, axis=1))             # (S, NH*HP)
    attn = jnp.concatenate(per_batch, axis=0)                        # (N*S, NH*HP)
    # wo rows are zero-padded to match the zero head lanes above.
    attn = jnp.dot(attn, wo_ref[...], preferred_element_type=f32) + bo_ref[...]

    # residual + LayerNorm1 (dropout p=0.1 is identity in eval mode)
    h = layer_norm(h + attn, g1_ref[...], b1_ref[...])

    # ---- feed-forward block (relu activation, post-norm) -----------------------
    ff = jnp.dot(h, wff1_ref[...], preferred_element_type=f32) + bff1_ref[...]
    ff = jnp.maximum(ff, 0.0)
    ff = jnp.dot(ff, wff2_ref[...], preferred_element_type=f32) + bff2_ref[...]
    h = layer_norm(h + ff, g2_ref[...], b2_ref[...])

    # ---- flatten: (S, N, D) -> (S, N*D)  == PyTorch output.view(S, -1) ---------
    # lane-block concat of aligned (S,128) tiles
    dec_in = jnp.concatenate([h[n * S:(n + 1) * S, :] for n in range(N)], axis=1)

    # ---- decoder: collapsed to one affine map ----------------------------------
    # (LeakyReLU(True) => slope 1.0 => identity, so dec1@dec2@dec3 is one Linear.)
    # Single VPU multiply + lane reduction instead of three MXU matmuls.
    out_ref[...] = (jnp.sum(dec_in * wdec_ref[...], axis=-1, keepdims=True)
                    + bdec_ref[...])


# ---- One-time parameter preparation (cached across calls) -----------------------
def prepare_params(params):
    """All weight transposes / reshapes / paddings / foldings happen ONCE here."""
    f32 = jnp.float32
    scale = 1.0 / math.sqrt(HD)

    wq, wk, wv = jnp.split(params["in_proj_w"], 3, axis=0)   # each (D, D)
    bq, bk, bv = jnp.split(params["in_proj_b"], 3, axis=0)   # each (D,)
    wq = wq * scale                                          # fold query scale
    bq = bq * scale

    def pad_heads_cols(w_t, b):
        # w_t: (D_in, NH*HD) -> (D_in, NH*HP); b: (NH*HD,) -> (1, NH*HP)
        wcols, bcols = [], []
        for hh in range(NH):
            wcols.append(jnp.pad(w_t[:, hh * HD:(hh + 1) * HD],
                                 ((0, 0), (0, HP - HD))))
            bcols.append(jnp.pad(b[hh * HD:(hh + 1) * HD], (0, HP - HD)))
        return jnp.concatenate(wcols, axis=1), jnp.concatenate(bcols)[None, :]

    wq_p, bq_p = pad_heads_cols(wq.T, bq)
    wk_p, bk_p = pad_heads_cols(wk.T, bk)
    wv_p, bv_p = pad_heads_cols(wv.T, bv)
    wqkv_pad = jnp.concatenate([wq_p, wk_p, wv_p], axis=1)   # (D, 3*NH*HP)
    bqkv_pad = jnp.concatenate([bq_p, bk_p, bv_p], axis=1)   # (1, 3*NH*HP)

    # out_proj: pad each head's 64 input rows to a 128-row block (matches the
    # zero lanes of the padded attention heads).
    wo_t = params["out_proj_w"].T                            # (NH*HD, D)
    wo_pad = jnp.concatenate(
        [jnp.pad(wo_t[hh * HD:(hh + 1) * HD, :], ((0, HP - HD), (0, 0)))
         for hh in range(NH)], axis=0)                       # (NH*HP, D)

    # Decoder collapse (valid because LeakyReLU(True) slope 1.0 == identity).
    w_fold = params["dec1_w"].T @ params["dec2_w"].T @ params["dec3_w"].T   # (N*D, 1)
    b_fold = ((params["dec1_b"] @ params["dec2_w"].T + params["dec2_b"])
              @ params["dec3_w"].T + params["dec3_b"])                      # (1,)

    pe_tiled = jnp.tile(params["pe"][:S], (N, 1))            # batch-major PE rows

    prepped = {
        "pe": pe_tiled,
        "wqkv": wqkv_pad, "bqkv": bqkv_pad,
        "wo": wo_pad, "bo": params["out_proj_b"].reshape(1, -1),
        "g1": params["ln1_g"].reshape(1, -1), "b1": params["ln1_b"].reshape(1, -1),
        "wff1": params["ff1_w"].T, "bff1": params["ff1_b"].reshape(1, -1),
        "wff2": params["ff2_w"].T, "bff2": params["ff2_b"].reshape(1, -1),
        "g2": params["ln2_g"].reshape(1, -1), "b2": params["ln2_b"].reshape(1, -1),
        "wdec": w_fold.reshape(1, N * D), "bdec": b_fold.reshape(1, 1),
    }
    return {k: jnp.asarray(v, f32) for k, v in prepped.items()}


# ---- Wrapper: minimal per-call glue + pallas_call --------------------------------
def transam_forward(src, prepped):
    assert src.shape == (S, N, D)
    # Only per-call layout work: seq-first (S,N,D) -> batch-major rows (N*S, D).
    x_bm = jnp.transpose(src, (1, 0, 2)).reshape(N * S, D).astype(jnp.float32)

    args = (x_bm, prepped["pe"],
            prepped["wqkv"], prepped["bqkv"], prepped["wo"], prepped["bo"],
            prepped["g1"], prepped["b1"],
            prepped["wff1"], prepped["bff1"], prepped["wff2"], prepped["bff2"],
            prepped["g2"], prepped["b2"],
            prepped["wdec"], prepped["bdec"])

    vmem = pl.BlockSpec(memory_space=pltpu.MemorySpace.VMEM)

    # No grid: single invocation, whole-array VMEM-resident blocks (< 1 MB total),
    # no pipeline prologue / double-buffering.  At production sizes, multiple src
    # windows would be batched over a leading "parallel" grid axis (engages the
    # second TensorCore on v7x) and matmul operands cast to bf16 on v5e.
    return pl.pallas_call(
        transam_kernel,
        out_shape=jax.ShapeDtypeStruct((S, 1), jnp.float32),
        in_specs=[vmem] * len(args),
        out_specs=vmem,
        compiler_params=pltpu.CompilerParams(vmem_limit_bytes=4 << 20),
    )(*args)


# ---- Pure-JAX reference (mirrors the PyTorch forward, un-collapsed) --------------
def reference_forward(src, params):
    S_, N_, D_ = src.shape
    pe = params["pe"][:S_]
    h = src + pe[:, None, :]                                 # PositionalEncoding

    x = h.reshape(S_ * N_, D_)
    qkv = x @ params["in_proj_w"].T + params["in_proj_b"]
    q, k, v = jnp.split(qkv, 3, axis=-1)

    def heads(t):
        return t.reshape(S_, N_, NH, HD).transpose(1, 2, 0, 3)   # (N, H, S, hd)

    qh, kh, vh = heads(q), heads(k), heads(v)
    logits = jnp.einsum("nhsd,nhtd->nhst", qh, kh) / jnp.sqrt(jnp.float32(HD))
    row = jnp.arange(S_)[:, None]
    col = jnp.arange(S_)[None, :]
    logits = jnp.where(col <= row, logits, -jnp.inf)             # causal src_mask
    p = jax.nn.softmax(logits, axis=-1)
    ao = jnp.einsum("nhst,nhtd->nhsd", p, vh)
    ao = ao.transpose(2, 0, 1, 3).reshape(S_, N_, D_)
    ao = ao @ params["out_proj_w"].T + params["out_proj_b"]

    def ln(x, g, b):
        mu = jnp.mean(x, axis=-1, keepdims=True)
        var = jnp.mean((x - mu) ** 2, axis=-1, keepdims=True)
        return (x - mu) / jnp.sqrt(var + LN_EPS) * g + b

    h = ln(h + ao, params["ln1_g"], params["ln1_b"])
    ff = jnp.maximum(h @ params["ff1_w"].T + params["ff1_b"], 0.0)
    ff = ff @ params["ff2_w"].T + params["ff2_b"]
    h = ln(h + ff, params["ln2_g"], params["ln2_b"])

    flat = h.reshape(S_, N_ * D_)                                # output.view(S, -1)
    z = flat @ params["dec1_w"].T + params["dec1_b"]
    z = jnp.where(z >= 0.0, z, LEAKY_SLOPE * z)
    z = z @ params["dec2_w"].T + params["dec2_b"]
    z = jnp.where(z >= 0.0, z, LEAKY_SLOPE * z)
    return z @ params["dec3_w"].T + params["dec3_b"]


# ---- Deterministic synthetic parameters ------------------------------------------
def make_positional_encoding(max_len, d_model):
    position = jnp.arange(max_len, dtype=jnp.float32)[:, None]
    div_term = jnp.exp(jnp.arange(0, d_model, 2, dtype=jnp.float32)
                       * (-math.log(10000.0) / d_model))
    pe = jnp.zeros((max_len, d_model), jnp.float32)
    pe = pe.at[:, 0::2].set(jnp.sin(position * div_term))
    pe = pe.at[:, 1::2].set(jnp.cos(position * div_term))
    return pe


def init_params(key):
    ks = jax.random.split(key, 24)
    idx = [0]

    def nrm(shape, scale):
        k = ks[idx[0]]
        idx[0] += 1
        return scale * jax.random.normal(k, shape, jnp.float32)

    return {
        "in_proj_w": nrm((3 * D, D), 0.05),
        "in_proj_b": nrm((3 * D,), 0.02),
        "out_proj_w": nrm((D, D), 0.05),
        "out_proj_b": nrm((D,), 0.02),
        "ln1_g": 1.0 + nrm((D,), 0.05),
        "ln1_b": nrm((D,), 0.05),
        "ff1_w": nrm((FF, D), 0.05),
        "ff1_b": nrm((FF,), 0.02),
        "ff2_w": nrm((D, FF), 0.05),
        "ff2_b": nrm((D,), 0.02),
        "ln2_g": 1.0 + nrm((D,), 0.05),
        "ln2_b": nrm((D,), 0.05),
        "dec1_w": nrm((H1, N * D), 0.05),
        "dec1_b": nrm((H1,), 0.02),
        "dec2_w": nrm((H2, H1), 0.05),
        "dec2_b": nrm((H2,), 0.02),
        "dec3_w": nrm((1, H2), 0.05),
        "dec3_b": nrm((1,), 0.02),
        "pe": make_positional_encoding(MAX_LEN, D),
    }


if __name__ == "__main__":
    key = jax.random.PRNGKey(0)
    pkey, xkey = jax.random.split(key)
    params = init_params(pkey)
    prepped = prepare_params(params)          # one-time; reused across all calls

    # src: (seq_len, stackNum, feature_size) — PyTorch seq-first layout.
    src = jax.random.normal(xkey, (S, N, D), jnp.float32)

    fwd = jax.jit(transam_forward)
    out = jax.block_until_ready(fwd(src, prepped))

    ref = reference_forward(src, params)
    assert out.shape == (S, 1)
    # Tolerance slightly relaxed vs. exact math: the softmax uses the EUP
    # approximate reciprocal and the decoder is folded host-side.
    if not jnp.allclose(out, ref, rtol=2e-3, atol=1e-3):
        raise AssertionError(f"kernel/reference mismatch:\n{out}\nvs\n{ref}")
    print("KERNEL_OK")
</pallas_src>

<mosaic_0001>
module attributes {stable_mosaic.version = 11 : i64} {
  func.func @transam_kernel(%arg0: memref<16x128xf32, #tpu.memory_space<vmem>>, %arg1: memref<16x128xf32, #tpu.memory_space<vmem>>, %arg2: memref<128x768xf32, #tpu.memory_space<vmem>>, %arg3: memref<1x768xf32, #tpu.memory_space<vmem>>, %arg4: memref<256x128xf32, #tpu.memory_space<vmem>>, %arg5: memref<1x128xf32, #tpu.memory_space<vmem>>, %arg6: memref<1x128xf32, #tpu.memory_space<vmem>>, %arg7: memref<1x128xf32, #tpu.memory_space<vmem>>, %arg8: memref<128x256xf32, #tpu.memory_space<vmem>>, %arg9: memref<1x256xf32, #tpu.memory_space<vmem>>, %arg10: memref<256x128xf32, #tpu.memory_space<vmem>>, %arg11: memref<1x128xf32, #tpu.memory_space<vmem>>, %arg12: memref<1x128xf32, #tpu.memory_space<vmem>>, %arg13: memref<1x128xf32, #tpu.memory_space<vmem>>, %arg14: memref<1x256xf32, #tpu.memory_space<vmem>>, %arg15: memref<1x1xf32, #tpu.memory_space<vmem>>, %arg16: memref<8x1xf32, #tpu.memory_space<vmem>>) attributes {dimension_semantics = [], scalar_prefetch = 0 : i64, scratch_operands = 0 : i64, tpu.core_type = #tpu.core_type<tc>} {
    %c0 = arith.constant 0 : index
    %c0_0 = arith.constant 0 : index
    %0 = vector.load %arg0[%c0, %c0_0] : memref<16x128xf32, #tpu.memory_space<vmem>>, vector<16x128xf32>
    %c0_1 = arith.constant 0 : index
    %c0_2 = arith.constant 0 : index
    %1 = vector.load %arg1[%c0_1, %c0_2] : memref<16x128xf32, #tpu.memory_space<vmem>>, vector<16x128xf32>
    %2 = arith.addf %0, %1 : vector<16x128xf32>
    %c0_3 = arith.constant 0 : index
    %c0_4 = arith.constant 0 : index
    %3 = vector.load %arg2[%c0_3, %c0_4] : memref<128x768xf32, #tpu.memory_space<vmem>>, vector<128x768xf32>
    %cst = arith.constant dense<0.000000e+00> : vector<16x768xf32>
    %4 = tpu.matmul %2, %3, %cst {dimension_numbers = #tpu.dot_dimension_numbers<[1], [0], [0], [1], [0, 0, 1, 1], [], []>} : vector<16x128xf32>, vector<128x768xf32>, vector<16x768xf32> -> vector<16x768xf32>
    %c0_5 = arith.constant 0 : index
    %c0_6 = arith.constant 0 : index
    %5 = vector.load %arg3[%c0_5, %c0_6] : memref<1x768xf32, #tpu.memory_space<vmem>>, vector<1x768xf32>
    %6 = vector.broadcast %5 : vector<1x768xf32> to vector<16x768xf32>
    %7 = arith.addf %4, %6 : vector<16x768xf32>
    %8 = tpu.iota {dimensions = array<i32: 0>} : vector<8x8xi32>
    %9 = tpu.iota {dimensions = array<i32: 1>} : vector<8x8xi32>
    %10 = arith.cmpi sle, %9, %8 : vector<8x8xi32>
    %11 = vector.extract_strided_slice %7 {offsets = [0, 0], sizes = [8, 128], strides = [1, 1]} : vector<16x768xf32> to vector<8x128xf32>
    %12 = vector.extract_strided_slice %7 {offsets = [0, 256], sizes = [8, 128], strides = [1, 1]} : vector<16x768xf32> to vector<8x128xf32>
    %13 = vector.extract_strided_slice %7 {offsets = [0, 512], sizes = [8, 128], strides = [1, 1]} : vector<16x768xf32> to vector<8x128xf32>
    %cst_7 = arith.constant dense<0.000000e+00> : vector<8x8xf32>
    %14 = tpu.matmul %11, %12, %cst_7 {dimension_numbers = #tpu.dot_dimension_numbers<[1], [1], [0], [0], [0, 0, 1, 0], [], []>} : vector<8x128xf32>, vector<8x128xf32>, vector<8x8xf32> -> vector<8x8xf32>
    %cst_8 = arith.constant -1.000000e+30 : f32
    %15 = vector.broadcast %cst_8 : f32 to vector<8x8xf32>
    %16 = arith.select %10, %14, %15 : vector<8x8xi1>, vector<8x8xf32>
    %cst_9 = arith.constant dense<0xFF800000> : vector<8xf32>
    %17 = vector.multi_reduction <maximumf>, %16, %cst_9 [1] : vector<8x8xf32> to vector<8xf32>
    %18 = vector.shape_cast %17 : vector<8xf32> to vector<8x1xf32>
    %19 = vector.broadcast %18 : vector<8x1xf32> to vector<8x8xf32>
    %20 = arith.subf %16, %19 : vector<8x8xf32>
    %21 = math.exp %20 : vector<8x8xf32>
    %cst_10 = arith.constant dense<0.000000e+00> : vector<8xf32>
    %22 = vector.multi_reduction <add>, %21, %cst_10 [1] : vector<8x8xf32> to vector<8xf32>
    %23 = vector.shape_cast %22 : vector<8xf32> to vector<8x1xf32>
    %24 = tpu.reciprocal %23 {approx = true} : vector<8x1xf32> -> vector<8x1xf32>
    %25 = vector.broadcast %24 : vector<8x1xf32> to vector<8x8xf32>
    %26 = arith.mulf %21, %25 : vector<8x8xf32>
    %cst_11 = arith.constant dense<0.000000e+00> : vector<8x128xf32>
    %27 = tpu.matmul %26, %13, %cst_11 {dimension_numbers = #tpu.dot_dimension_numbers<[1], [0], [0], [1], [0, 0, 1, 1], [], []>} : vector<8x8xf32>, vector<8x128xf32>, vector<8x128xf32> -> vector<8x128xf32>
    %28 = vector.extract_strided_slice %7 {offsets = [0, 128], sizes = [8, 128], strides = [1, 1]} : vector<16x768xf32> to vector<8x128xf32>
    %29 = vector.extract_strided_slice %7 {offsets = [0, 384], sizes = [8, 128], strides = [1, 1]} : vector<16x768xf32> to vector<8x128xf32>
    %30 = vector.extract_strided_slice %7 {offsets = [0, 640], sizes = [8, 128], strides = [1, 1]} : vector<16x768xf32> to vector<8x128xf32>
    %cst_12 = arith.constant dense<0.000000e+00> : vector<8x8xf32>
    %31 = tpu.matmul %28, %29, %cst_12 {dimension_numbers = #tpu.dot_dimension_numbers<[1], [1], [0], [0], [0, 0, 1, 0], [], []>} : vector<8x128xf32>, vector<8x128xf32>, vector<8x8xf32> -> vector<8x8xf32>
    %cst_13 = arith.constant -1.000000e+30 : f32
    %32 = vector.broadcast %cst_13 : f32 to vector<8x8xf32>
    %33 = arith.select %10, %31, %32 : vector<8x8xi1>, vector<8x8xf32>
    %cst_14 = arith.constant dense<0xFF800000> : vector<8xf32>
    %34 = vector.multi_reduction <maximumf>, %33, %cst_14 [1] : vector<8x8xf32> to vector<8xf32>
    %35 = vector.shape_cast %34 : vector<8xf32> to vector<8x1xf32>
    %36 = vector.broadcast %35 : vector<8x1xf32> to vector<8x8xf32>
    %37 = arith.subf %33, %36 : vector<8x8xf32>
    %38 = math.exp %37 : vector<8x8xf32>
    %cst_15 = arith.constant dense<0.000000e+00> : vector<8xf32>
    %39 = vector.multi_reduction <add>, %38, %cst_15 [1] : vector<8x8xf32> to vector<8xf32>
    %40 = vector.shape_cast %39 : vector<8xf32> to vector<8x1xf32>
    %41 = tpu.reciprocal %40 {approx = true} : vector<8x1xf32> -> vector<8x1xf32>
    %42 = vector.broadcast %41 : vector<8x1xf32> to vector<8x8xf32>
    %43 = arith.mulf %38, %42 : vector<8x8xf32>
    %cst_16 = arith.constant dense<0.000000e+00> : vector<8x128xf32>
    %44 = tpu.matmul %43, %30, %cst_16 {dimension_numbers = #tpu.dot_dimension_numbers<[1], [0], [0], [1], [0, 0, 1, 1], [], []>} : vector<8x8xf32>, vector<8x128xf32>, vector<8x128xf32> -> vector<8x128xf32>
    %45 = tpu.concatenate %27, %44 in 1 : vector<8x128xf32>, vector<8x128xf32> -> vector<8x256xf32>
    %46 = vector.extract_strided_slice %7 {offsets = [8, 0], sizes = [8, 128], strides = [1, 1]} : vector<16x768xf32> to vector<8x128xf32>
    %47 = vector.extract_strided_slice %7 {offsets = [8, 256], sizes = [8, 128], strides = [1, 1]} : vector<16x768xf32> to vector<8x128xf32>
    %48 = vector.extract_strided_slice %7 {offsets = [8, 512], sizes = [8, 128], strides = [1, 1]} : vector<16x768xf32> to vector<8x128xf32>
    %cst_17 = arith.constant dense<0.000000e+00> : vector<8x8xf32>
    %49 = tpu.matmul %46, %47, %cst_17 {dimension_numbers = #tpu.dot_dimension_numbers<[1], [1], [0], [0], [0, 0, 1, 0], [], []>} : vector<8x128xf32>, vector<8x128xf32>, vector<8x8xf32> -> vector<8x8xf32>
    %cst_18 = arith.constant -1.000000e+30 : f32
    %50 = vector.broadcast %cst_18 : f32 to vector<8x8xf32>
    %51 = arith.select %10, %49, %50 : vector<8x8xi1>, vector<8x8xf32>
    %cst_19 = arith.constant dense<0xFF800000> : vector<8xf32>
    %52 = vector.multi_reduction <maximumf>, %51, %cst_19 [1] : vector<8x8xf32> to vector<8xf32>
    %53 = vector.shape_cast %52 : vector<8xf32> to vector<8x1xf32>
    %54 = vector.broadcast %53 : vector<8x1xf32> to vector<8x8xf32>
    %55 = arith.subf %51, %54 : vector<8x8xf32>
    %56 = math.exp %55 : vector<8x8xf32>
    %cst_20 = arith.constant dense<0.000000e+00> : vector<8xf32>
    %57 = vector.multi_reduction <add>, %56, %cst_20 [1] : vector<8x8xf32> to vector<8xf32>
    %58 = vector.shape_cast %57 : vector<8xf32> to vector<8x1xf32>
    %59 = tpu.reciprocal %58 {approx = true} : vector<8x1xf32> -> vector<8x1xf32>
    %60 = vector.broadcast %59 : vector<8x1xf32> to vector<8x8xf32>
    %61 = arith.mulf %56, %60 : vector<8x8xf32>
    %cst_21 = arith.constant dense<0.000000e+00> : vector<8x128xf32>
    %62 = tpu.matmul %61, %48, %cst_21 {dimension_numbers = #tpu.dot_dimension_numbers<[1], [0], [0], [1], [0, 0, 1, 1], [], []>} : vector<8x8xf32>, vector<8x128xf32>, vector<8x128xf32> -> vector<8x128xf32>
    %63 = vector.extract_strided_slice %7 {offsets = [8, 128], sizes = [8, 128], strides = [1, 1]} : vector<16x768xf32> to vector<8x128xf32>
    %64 = vector.extract_strided_slice %7 {offsets = [8, 384], sizes = [8, 128], strides = [1, 1]} : vector<16x768xf32> to vector<8x128xf32>
    %65 = vector.extract_strided_slice %7 {offsets = [8, 640], sizes = [8, 128], strides = [1, 1]} : vector<16x768xf32> to vector<8x128xf32>
    %cst_22 = arith.constant dense<0.000000e+00> : vector<8x8xf32>
    %66 = tpu.matmul %63, %64, %cst_22 {dimension_numbers = #tpu.dot_dimension_numbers<[1], [1], [0], [0], [0, 0, 1, 0], [], []>} : vector<8x128xf32>, vector<8x128xf32>, vector<8x8xf32> -> vector<8x8xf32>
    %cst_23 = arith.constant -1.000000e+30 : f32
    %67 = vector.broadcast %cst_23 : f32 to vector<8x8xf32>
    %68 = arith.select %10, %66, %67 : vector<8x8xi1>, vector<8x8xf32>
    %cst_24 = arith.constant dense<0xFF800000> : vector<8xf32>
    %69 = vector.multi_reduction <maximumf>, %68, %cst_24 [1] : vector<8x8xf32> to vector<8xf32>
    %70 = vector.shape_cast %69 : vector<8xf32> to vector<8x1xf32>
    %71 = vector.broadcast %70 : vector<8x1xf32> to vector<8x8xf32>
    %72 = arith.subf %68, %71 : vector<8x8xf32>
    %73 = math.exp %72 : vector<8x8xf32>
    %cst_25 = arith.constant dense<0.000000e+00> : vector<8xf32>
    %74 = vector.multi_reduction <add>, %73, %cst_25 [1] : vector<8x8xf32> to vector<8xf32>
    %75 = vector.shape_cast %74 : vector<8xf32> to vector<8x1xf32>
    %76 = tpu.reciprocal %75 {approx = true} : vector<8x1xf32> -> vector<8x1xf32>
    %77 = vector.broadcast %76 : vector<8x1xf32> to vector<8x8xf32>
    %78 = arith.mulf %73, %77 : vector<8x8xf32>
    %cst_26 = arith.constant dense<0.000000e+00> : vector<8x128xf32>
    %79 = tpu.matmul %78, %65, %cst_26 {dimension_numbers = #tpu.dot_dimension_numbers<[1], [0], [0], [1], [0, 0, 1, 1], [], []>} : vector<8x8xf32>, vector<8x128xf32>, vector<8x128xf32> -> vector<8x128xf32>
    %80 = tpu.concatenate %62, %79 in 1 : vector<8x128xf32>, vector<8x128xf32> -> vector<8x256xf32>
    %81 = tpu.concatenate %45, %80 in 0 : vector<8x256xf32>, vector<8x256xf32> -> vector<16x256xf32>
    %c0_27 = arith.constant 0 : index
    %c0_28 = arith.constant 0 : index
    %82 = vector.load %arg4[%c0_27, %c0_28] : memref<256x128xf32, #tpu.memory_space<vmem>>, vector<256x128xf32>
    %cst_29 = arith.constant dense<0.000000e+00> : vector<16x128xf32>
    %83 = tpu.matmul %81, %82, %cst_29 {dimension_numbers = #tpu.dot_dimension_numbers<[1], [0], [0], [1], [0, 0, 1, 1], [], []>} : vector<16x256xf32>, vector<256x128xf32>, vector<16x128xf32> -> vector<16x128xf32>
    %c0_30 = arith.constant 0 : index
    %c0_31 = arith.constant 0 : index
    %84 = vector.load %arg5[%c0_30, %c0_31] : memref<1x128xf32, #tpu.memory_space<vmem>>, vector<1x128xf32>
    %85 = vector.broadcast %84 : vector<1x128xf32> to vector<16x128xf32>
    %86 = arith.addf %83, %85 : vector<16x128xf32>
    %87 = arith.addf %2, %86 : vector<16x128xf32>
    %c0_32 = arith.constant 0 : index
    %c0_33 = arith.constant 0 : index
    %88 = vector.load %arg6[%c0_32, %c0_33] : memref<1x128xf32, #tpu.memory_space<vmem>>, vector<1x128xf32>
    %c0_34 = arith.constant 0 : index
    %c0_35 = arith.constant 0 : index
    %89 = vector.load %arg7[%c0_34, %c0_35] : memref<1x128xf32, #tpu.memory_space<vmem>>, vector<1x128xf32>
    %cst_36 = arith.constant dense<0.000000e+00> : vector<16xf32>
    %90 = vector.multi_reduction <add>, %87, %cst_36 [1] : vector<16x128xf32> to vector<16xf32>
    %91 = vector.shape_cast %90 : vector<16xf32> to vector<16x1xf32>
    %cst_37 = arith.constant 1.280000e+02 : f32
    %92 = vector.broadcast %cst_37 : f32 to vector<16x1xf32>
    %93 = arith.divf %91, %92 : vector<16x1xf32>
    %94 = vector.broadcast %93 : vector<16x1xf32> to vector<16x128xf32>
    %95 = arith.subf %87, %94 : vector<16x128xf32>
    %96 = arith.mulf %95, %95 : vector<16x128xf32>
    %cst_38 = arith.constant dense<0.000000e+00> : vector<16xf32>
    %97 = vector.multi_reduction <add>, %96, %cst_38 [1] : vector<16x128xf32> to vector<16xf32>
    %98 = vector.shape_cast %97 : vector<16xf32> to vector<16x1xf32>
    %cst_39 = arith.constant 1.280000e+02 : f32
    %99 = vector.broadcast %cst_39 : f32 to vector<16x1xf32>
    %100 = arith.divf %98, %99 : vector<16x1xf32>
    %cst_40 = arith.constant 9.99999974E-6 : f32
    %101 = vector.broadcast %cst_40 : f32 to vector<16x1xf32>
    %102 = arith.addf %100, %101 : vector<16x1xf32>
    %103 = math.rsqrt %102 : vector<16x1xf32>
    %104 = vector.broadcast %103 : vector<16x1xf32> to vector<16x128xf32>
    %105 = arith.mulf %95, %104 : vector<16x128xf32>
    %106 = vector.broadcast %88 : vector<1x128xf32> to vector<16x128xf32>
    %107 = arith.mulf %105, %106 : vector<16x128xf32>
    %108 = vector.broadcast %89 : vector<1x128xf32> to vector<16x128xf32>
    %109 = arith.addf %107, %108 : vector<16x128xf32>
    %c0_41 = arith.constant 0 : index
    %c0_42 = arith.constant 0 : index
    %110 = vector.load %arg8[%c0_41, %c0_42] : memref<128x256xf32, #tpu.memory_space<vmem>>, vector<128x256xf32>
    %cst_43 = arith.constant dense<0.000000e+00> : vector<16x256xf32>
    %111 = tpu.matmul %109, %110, %cst_43 {dimension_numbers = #tpu.dot_dimension_numbers<[1], [0], [0], [1], [0, 0, 1, 1], [], []>} : vector<16x128xf32>, vector<128x256xf32>, vector<16x256xf32> -> vector<16x256xf32>
    %c0_44 = arith.constant 0 : index
    %c0_45 = arith.constant 0 : index
    %112 = vector.load %arg9[%c0_44, %c0_45] : memref<1x256xf32, #tpu.memory_space<vmem>>, vector<1x256xf32>
    %113 = vector.broadcast %112 : vector<1x256xf32> to vector<16x256xf32>
    %114 = arith.addf %111, %113 : vector<16x256xf32>
    %cst_46 = arith.constant 0.000000e+00 : f32
    %115 = vector.broadcast %cst_46 : f32 to vector<16x256xf32>
    %116 = arith.maximumf %114, %115 : vector<16x256xf32>
    %c0_47 = arith.constant 0 : index
    %c0_48 = arith.constant 0 : index
    %117 = vector.load %arg10[%c0_47, %c0_48] : memref<256x128xf32, #tpu.memory_space<vmem>>, vector<256x128xf32>
    %cst_49 = arith.constant dense<0.000000e+00> : vector<16x128xf32>
    %118 = tpu.matmul %116, %117, %cst_49 {dimension_numbers = #tpu.dot_dimension_numbers<[1], [0], [0], [1], [0, 0, 1, 1], [], []>} : vector<16x256xf32>, vector<256x128xf32>, vector<16x128xf32> -> vector<16x128xf32>
    %c0_50 = arith.constant 0 : index
    %c0_51 = arith.constant 0 : index
    %119 = vector.load %arg11[%c0_50, %c0_51] : memref<1x128xf32, #tpu.memory_space<vmem>>, vector<1x128xf32>
    %120 = vector.broadcast %119 : vector<1x128xf32> to vector<16x128xf32>
    %121 = arith.addf %118, %120 : vector<16x128xf32>
    %122 = arith.addf %109, %121 : vector<16x128xf32>
    %c0_52 = arith.constant 0 : index
    %c0_53 = arith.constant 0 : index
    %123 = vector.load %arg12[%c0_52, %c0_53] : memref<1x128xf32, #tpu.memory_space<vmem>>, vector<1x128xf32>
    %c0_54 = arith.constant 0 : index
    %c0_55 = arith.constant 0 : index
    %124 = vector.load %arg13[%c0_54, %c0_55] : memref<1x128xf32, #tpu.memory_space<vmem>>, vector<1x128xf32>
    %cst_56 = arith.constant dense<0.000000e+00> : vector<16xf32>
    %125 = vector.multi_reduction <add>, %122, %cst_56 [1] : vector<16x128xf32> to vector<16xf32>
    %126 = vector.shape_cast %125 : vector<16xf32> to vector<16x1xf32>
    %cst_57 = arith.constant 1.280000e+02 : f32
    %127 = vector.broadcast %cst_57 : f32 to vector<16x1xf32>
    %128 = arith.divf %126, %127 : vector<16x1xf32>
    %129 = vector.broadcast %128 : vector<16x1xf32> to vector<16x128xf32>
    %130 = arith.subf %122, %129 : vector<16x128xf32>
    %131 = arith.mulf %130, %130 : vector<16x128xf32>
    %cst_58 = arith.constant dense<0.000000e+00> : vector<16xf32>
    %132 = vector.multi_reduction <add>, %131, %cst_58 [1] : vector<16x128xf32> to vector<16xf32>
    %133 = vector.shape_cast %132 : vector<16xf32> to vector<16x1xf32>
    %cst_59 = arith.constant 1.280000e+02 : f32
    %134 = vector.broadcast %cst_59 : f32 to vector<16x1xf32>
    %135 = arith.divf %133, %134 : vector<16x1xf32>
    %cst_60 = arith.constant 9.99999974E-6 : f32
    %136 = vector.broadcast %cst_60 : f32 to vector<16x1xf32>
    %137 = arith.addf %135, %136 : vector<16x1xf32>
    %138 = math.rsqrt %137 : vector<16x1xf32>
    %139 = vector.broadcast %138 : vector<16x1xf32> to vector<16x128xf32>
    %140 = arith.mulf %130, %139 : vector<16x128xf32>
    %141 = vector.broadcast %123 : vector<1x128xf32> to vector<16x128xf32>
    %142 = arith.mulf %140, %141 : vector<16x128xf32>
    %143 = vector.broadcast %124 : vector<1x128xf32> to vector<16x128xf32>
    %144 = arith.addf %142, %143 : vector<16x128xf32>
    %145 = vector.extract_strided_slice %144 {offsets = [0, 0], sizes = [8, 128], strides = [1, 1]} : vector<16x128xf32> to vector<8x128xf32>
    %146 = vector.extract_strided_slice %144 {offsets = [8, 0], sizes = [8, 128], strides = [1, 1]} : vector<16x128xf32> to vector<8x128xf32>
    %147 = tpu.concatenate %145, %146 in 1 : vector<8x128xf32>, vector<8x128xf32> -> vector<8x256xf32>
    %c0_61 = arith.constant 0 : index
    %c0_62 = arith.constant 0 : index
    %148 = vector.load %arg14[%c0_61, %c0_62] : memref<1x256xf32, #tpu.memory_space<vmem>>, vector<1x256xf32>
    %149 = vector.broadcast %148 : vector<1x256xf32> to vector<8x256xf32>
    %150 = arith.mulf %147, %149 : vector<8x256xf32>
    %cst_63 = arith.constant dense<0.000000e+00> : vector<8xf32>
    %151 = vector.multi_reduction <add>, %150, %cst_63 [1] : vector<8x256xf32> to vector<8xf32>
    %152 = vector.shape_cast %151 : vector<8xf32> to vector<8x1xf32>
    %c0_64 = arith.constant 0 : index
    %c0_65 = arith.constant 0 : index
    %153 = vector.load %arg15[%c0_64, %c0_65] : memref<1x1xf32, #tpu.memory_space<vmem>>, vector<1x1xf32>
    %154 = vector.broadcast %153 : vector<1x1xf32> to vector<8x1xf32>
    %155 = arith.addf %152, %154 : vector<8x1xf32>
    %c0_66 = arith.constant 0 : index
    %c0_67 = arith.constant 0 : index
    %156 = vector.load %arg16[%c0_66, %c0_67] : memref<8x1xf32, #tpu.memory_space<vmem>>, vector<8x1xf32>
    tpu.vector_store %arg16[%c0_66, %c0_67], %155 {strides = array<i32>} : memref<8x1xf32, #tpu.memory_space<vmem>>, vector<8x1xf32>,
    return
  }
}

</mosaic_0001>

<llo_original>
// kernel: transam_forward.1
$region0: #{transam_forward.1}
  #allocation0 [shape = 'u32[]', space=smem, size = 0x4, offset = 0x4, fixed_abs, tag = 'smem constant byte address 0x4 - core index']
  #allocation1 [shape = 'u32[72,128]{1,0:T(1,128)}', space=vmem, size = 0x9000, scoped, tag = 'internal scratch']
  #allocation2 [shape = 'f32[1,1]{1,0:T(1,128)S(1)}', space=vmem, size = 0x200, scoped, tag = 'scoped memory for transam_forward.1']
  %s0 = inlined_call_operand.vmem [shape: f32[16,128], index: 0, kind: input, shape index: {}]
  %s1 = inlined_call_operand.vmem [shape: f32[16,128], index: 1, kind: input, shape index: {}]
  %s2 = inlined_call_operand.hbm [shape: f32[128,768], index: 2, kind: input, shape index: {}]
  %s3 = inlined_call_operand.vmem [shape: f32[1,768], index: 3, kind: input, shape index: {}]
  %s4 = inlined_call_operand.hbm [shape: f32[256,128], index: 4, kind: input, shape index: {}]
  %s5 = inlined_call_operand.vmem [shape: f32[1,128], index: 5, kind: input, shape index: {}]
  %s6 = inlined_call_operand.vmem [shape: f32[1,128], index: 6, kind: input, shape index: {}]
  %s7 = inlined_call_operand.vmem [shape: f32[1,128], index: 7, kind: input, shape index: {}]
  %s8 = inlined_call_operand.hbm [shape: f32[128,256], index: 8, kind: input, shape index: {}]
  %s9 = inlined_call_operand.vmem [shape: f32[1,256], index: 9, kind: input, shape index: {}]
  %s10 = inlined_call_operand.hbm [shape: f32[256,128], index: 10, kind: input, shape index: {}]
  %s11 = inlined_call_operand.vmem [shape: f32[1,128], index: 11, kind: input, shape index: {}]
  %s12 = inlined_call_operand.vmem [shape: f32[1,128], index: 12, kind: input, shape index: {}]
  %s13 = inlined_call_operand.vmem [shape: f32[1,128], index: 13, kind: input, shape index: {}]
  %s14 = inlined_call_operand.vmem [shape: f32[1,256], index: 14, kind: input, shape index: {}]
  %s15 = inlined_call_operand.<no memory space> [shape: f32[1,1], index: 15, kind: input, shape index: {}]
  %s16 = inlined_call_operand.vmem [shape: f32[8,1], index: 16, kind: output, shape index: {}]
  %s17 = sld [smem:[#allocation0]]
  $region90: #{transam_forward.1} parent=0
    _
  %s19 = ssub.s32 1, %s17
  %s20 = scalar_select 0, %s19, %s17
  %v21 = vstv %s15
  %22 = vst [vmem:[#allocation2] sm:$0x1] %v21
  $region1: #{transam_forward.1} parent=0
    #allocation3 [shape = 'u8[393216]{0}', space=vmem, size = 0x60000, scoped, tag = 'input window, operand 2, single buffered']
    #allocation4 [shape = 's32[1]{0}', space=sflag, size = 0x4, scoped, tag = 'scoped memory for transam_forward.1']
    #allocation5 [shape = 'u8[131072]{0}', space=vmem, size = 0x20000, scoped, tag = 'input window, operand 4, single buffered']
    #allocation6 [shape = 's32[1]{0}', space=sflag, size = 0x4, scoped, tag = 'scoped memory for transam_forward.1']
    #allocation7 [shape = 'u8[131072]{0}', space=vmem, size = 0x20000, scoped, tag = 'input window, operand 8, single buffered']
    #allocation8 [shape = 'u8[131072]{0}', space=vmem, size = 0x20000, scoped, tag = 'input window, operand 10, single buffered']
    #allocation9 [shape = 's32[1]{0}', space=sflag, size = 0x4, scoped, tag = 'scoped memory for transam_forward.1']
    %23 = vsyncpa [#allocation4], 0
    %24 = vsyncpa [#allocation6], 0
    %25 = vsyncpa [#allocation9], 0
    // Predicated region
    $region2: #{transam_forward.1} parent=1 // pred_check
      _
    $region3: #{transam_forward.1} parent=1 // pred_check_branch
      %27 = sbr.rel (0) target = $region5
    $region4: #{transam_forward.1} parent=1 // pred_region
      _
    $region5: #{transam_forward.1} parent=1 // pred_fallthru
      _
    // Predicated region
    $region6: #{transam_forward.1} parent=1 // pred_check
      _
    $region7: #{transam_forward.1} parent=1 // pred_check_branch
      %29 = sbr.rel (0) target = $region9
    $region8: #{transam_forward.1} parent=1 // pred_region
      _
    $region9: #{transam_forward.1} parent=1 // pred_fallthru
      _
    // Predicated region
    $region10: #{transam_forward.1} parent=1 // pred_check
      _
    $region11: #{transam_forward.1} parent=1 // pred_check_branch
      %31 = sbr.rel (0) target = $region13
    $region12: #{transam_forward.1} parent=1 // pred_region
      %33 = vsyncadd [#allocation4], 0
      %s34 = sshll.u32 %s2, 4
      %s35 = int_to_ptr.hbm [resolvable:$true] %s34
      %s36 = sshll.u32 [#allocation3], 4
      %s37 = int_to_ptr.vmem [resolvable:$true] %s36
      %42 = dma.hbm_to_vmem [thread:$0]  %s35, 12288, %s37, [#allocation4], 768, 768, 48
    $region13: #{transam_forward.1} parent=1 // pred_fallthru
      _
    // Predicated region
    $region14: #{transam_forward.1} parent=1 // pred_check
      _
    $region15: #{transam_forward.1} parent=1 // pred_check_branch
      %44 = sbr.rel (0) target = $region17
    $region16: #{transam_forward.1} parent=1 // pred_region
      _
    $region17: #{transam_forward.1} parent=1 // pred_fallthru
      _
    // Predicated region
    $region18: #{transam_forward.1} parent=1 // pred_check
      _
    $region19: #{transam_forward.1} parent=1 // pred_check_branch
      %46 = sbr.rel (0) target = $region21
    $region20: #{transam_forward.1} parent=1 // pred_region
      %48 = vsyncadd [#allocation6], 0
      %s49 = sshll.u32 %s4, 4
      %s50 = int_to_ptr.hbm [resolvable:$true] %s49
      %s51 = sshll.u32 [#allocation5], 4
      %s52 = int_to_ptr.vmem [resolvable:$true] %s51
      %57 = dma.hbm_to_vmem [thread:$0]  %s50, 4096, %s52, [#allocation6], 128, 128, 8
    $region21: #{transam_forward.1} parent=1 // pred_fallthru
      _
    // Predicated region
    $region22: #{transam_forward.1} parent=1 // pred_check
      _
    $region23: #{transam_forward.1} parent=1 // pred_check_branch
      %59 = sbr.rel (0) target = $region25
    $region24: #{transam_forward.1} parent=1 // pred_region
      _
    $region25: #{transam_forward.1} parent=1 // pred_fallthru
      _
    // Predicated region
    $region26: #{transam_forward.1} parent=1 // pred_check
      _
    $region27: #{transam_forward.1} parent=1 // pred_check_branch
      %61 = sbr.rel (0) target = $region29
    $region28: #{transam_forward.1} parent=1 // pred_region
      _
    $region29: #{transam_forward.1} parent=1 // pred_fallthru
      _
    // Predicated region
    $region30: #{transam_forward.1} parent=1 // pred_check
      _
    $region31: #{transam_forward.1} parent=1 // pred_check_branch
      %63 = sbr.rel (0) target = $region33
    $region32: #{transam_forward.1} parent=1 // pred_region
      _
    $region33: #{transam_forward.1} parent=1 // pred_fallthru
      _
    // Predicated region
    $region34: #{transam_forward.1} parent=1 // pred_check
      _
    $region35: #{transam_forward.1} parent=1 // pred_check_branch
      %65 = sbr.rel (0) target = $region37
    $region36: #{transam_forward.1} parent=1 // pred_region
      %67 = vsyncadd [#allocation6], 0
      %s68 = sshll.u32 %s8, 4
      %s69 = int_to_ptr.hbm [resolvable:$true] %s68
      %s70 = sshll.u32 [#allocation7], 4
      %s71 = int_to_ptr.vmem [resolvable:$true] %s70
      %76 = dma.hbm_to_vmem [thread:$0]  %s69, 4096, %s71, [#allocation6], 256, 256, 16
    $region37: #{transam_forward.1} parent=1 // pred_fallthru
      _
    // Predicated region
    $region38: #{transam_forward.1} parent=1 // pred_check
      _
    $region39: #{transam_forward.1} parent=1 // pred_check_branch
      %78 = sbr.rel (0) target = $region41
    $region40: #{transam_forward.1} parent=1 // pred_region
      _
    $region41: #{transam_forward.1} parent=1 // pred_fallthru
      _
    // Predicated region
    $region42: #{transam_forward.1} parent=1 // pred_check
      _
    $region43: #{transam_forward.1} parent=1 // pred_check_branch
      %80 = sbr.rel (0) target = $region45
    $region44: #{transam_forward.1} parent=1 // pred_region
      %82 = vsyncadd [#allocation9], 0
      %s83 = sshll.u32 %s10, 4
      %s84 = int_to_ptr.hbm [resolvable:$true] %s83
      %s85 = sshll.u32 [#allocation8], 4
      %s86 = int_to_ptr.vmem [resolvable:$true] %s85
      %91 = dma.hbm_to_vmem [thread:$0]  %s84, 4096, %s86, [#allocation9], 128, 128, 8
    $region45: #{transam_forward.1} parent=1 // pred_fallthru
      _
    // Predicated region
    $region46: #{transam_forward.1} parent=1 // pred_check
      _
    $region47: #{transam_forward.1} parent=1 // pred_check_branch
      %93 = sbr.rel (0) target = $region49
    $region48: #{transam_forward.1} parent=1 // pred_region
      _
    $region49: #{transam_forward.1} parent=1 // pred_fallthru
      _
    // Predicated region
    $region50: #{transam_forward.1} parent=1 // pred_check
      _
    $region51: #{transam_forward.1} parent=1 // pred_check_branch
      %95 = sbr.rel (0) target = $region53
    $region52: #{transam_forward.1} parent=1 // pred_region
      _
    $region53: #{transam_forward.1} parent=1 // pred_fallthru
      _
    // Predicated region
    $region54: #{transam_forward.1} parent=1 // pred_check
      _
    $region55: #{transam_forward.1} parent=1 // pred_check_branch
      %97 = sbr.rel (0) target = $region57
    $region56: #{transam_forward.1} parent=1 // pred_region
      _
    $region57: #{transam_forward.1} parent=1 // pred_fallthru
      _
    // Predicated region
    $region58: #{transam_forward.1} parent=1 // pred_check
      _
    $region59: #{transam_forward.1} parent=1 // pred_check_branch
      %99 = sbr.rel (0) target = $region61
    $region60: #{transam_forward.1} parent=1 // pred_region
      _
    $region61: #{transam_forward.1} parent=1 // pred_fallthru
      _
    // Predicated region
    $region62: #{transam_forward.1} parent=1 // pred_check
      _
    $region63: #{transam_forward.1} parent=1 // pred_check_branch
      %101 = sbr.rel (0) target = $region65
    $region64: #{transam_forward.1} parent=1 // pred_region
      _
    $region65: #{transam_forward.1} parent=1 // pred_fallthru
      _
    // Predicated region
    $region66: #{transam_forward.1} parent=1 // pred_check
      _
    $region67: #{transam_forward.1} parent=1 // pred_check_branch
      %103 = sbr.rel (0) target = $region69
    $region68: #{transam_forward.1} parent=1 // pred_region
      %105 = dma.done [#allocation4], 12288
    $region69: #{transam_forward.1} parent=1 // pred_fallthru
      _
    // Predicated region
    $region70: #{transam_forward.1} parent=1 // pred_check
      _
    $region71: #{transam_forward.1} parent=1 // pred_check_branch
      %107 = sbr.rel (0) target = $region73
    $region72: #{transam_forward.1} parent=1 // pred_region
      %109 = dma.done [#allocation6], 4096
    $region73: #{transam_forward.1} parent=1 // pred_fallthru
      _
    // Predicated region
    $region74: #{transam_forward.1} parent=1 // pred_check
      _
    $region75: #{transam_forward.1} parent=1 // pred_check_branch
      %111 = sbr.rel (0) target = $region77
    $region76: #{transam_forward.1} parent=1 // pred_region
      %113 = dma.done [#allocation6], 4096
    $region77: #{transam_forward.1} parent=1 // pred_fallthru
      _
    // Predicated region
    $region78: #{transam_forward.1} parent=1 // pred_check
      _
    $region79: #{transam_forward.1} parent=1 // pred_check_branch
      %115 = sbr.rel (0) target = $region81
    $region80: #{transam_forward.1} parent=1 // pred_region
      %117 = dma.done [#allocation9], 4096
    $region81: #{transam_forward.1} parent=1 // pred_fallthru
      _
    %v118 = vld [vmem:[%s0] sm:$0xff]
    %v119 = vld [vmem:[%s0 + $0x8] sm:$0xff]
    %v120 = vld [vmem:[%s1] sm:$0xff]
    %v121 = vld [vmem:[%s1 + $0x8] sm:$0xff]
    %v122 = vadd.f32 %v118, %v120
    %v123 = vadd.f32 %v119, %v121
    %v124 = vld [vmem:[#allocation3] sm:$0xff]
    %v125 = vld [vmem:[#allocation3 + $0x8] sm:$0xff]
    %v126 = vld [vmem:[#allocation3 + $0x10] sm:$0xff]
    %v127 = vld [vmem:[#allocation3 + $0x18] sm:$0xff]
    %v128 = vld [vmem:[#allocation3 + $0x20] sm:$0xff]
    %v129 = vld [vmem:[#allocation3 + $0x28] sm:$0xff]
    %v130 = vld [vmem:[#allocation3 + $0x30] sm:$0xff]
    %v131 = vld [vmem:[#allocation3 + $0x38] sm:$0xff]
    %v132 = vld [vmem:[#allocation3 + $0x40] sm:$0xff]
    %v133 = vld [vmem:[#allocation3 + $0x48] sm:$0xff]
    %v134 = vld [vmem:[#allocation3 + $0x50] sm:$0xff]
    %v135 = vld [vmem:[#allocation3 + $0x58] sm:$0xff]
    %v136 = vld [vmem:[#allocation3 + $0x60] sm:$0xff]
    %v137 = vld [vmem:[#allocation3 + $0x68] sm:$0xff]
    %v138 = vld [vmem:[#allocation3 + $0x70] sm:$0xff]
    %v139 = vld [vmem:[#allocation3 + $0x78] sm:$0xff]
    %v140 = vld [vmem:[#allocation3 + $0x80] sm:$0xff]
    %v141 = vld [vmem:[#allocation3 + $0x88] sm:$0xff]
    %v142 = vld [vmem:[#allocation3 + $0x90] sm:$0xff]
    %v143 = vld [vmem:[#allocation3 + $0x98] sm:$0xff]
    %v144 = vld [vmem:[#allocation3 + $0xa0] sm:$0xff]
    %v145 = vld [vmem:[#allocation3 + $0xa8] sm:$0xff]
    %v146 = vld [vmem:[#allocation3 + $0xb0] sm:$0xff]
    %v147 = vld [vmem:[#allocation3 + $0xb8] sm:$0xff]
    %v148 = vld [vmem:[#allocation3 + $0xc0] sm:$0xff]
    %v149 = vld [vmem:[#allocation3 + $0xc8] sm:$0xff]
    %v150 = vld [vmem:[#allocation3 + $0xd0] sm:$0xff]
    %v151 = vld [vmem:[#allocation3 + $0xd8] sm:$0xff]
    %v152 = vld [vmem:[#allocation3 + $0xe0] sm:$0xff]
    %v153 = vld [vmem:[#allocation3 + $0xe8] sm:$0xff]
    %v154 = vld [vmem:[#allocation3 + $0xf0] sm:$0xff]
    %v155 = vld [vmem:[#allocation3 + $0xf8] sm:$0xff]
    %v156 = vld [vmem:[#allocation3 + $0x100] sm:$0xff]
    %v157 = vld [vmem:[#allocation3 + $0x108] sm:$0xff]
    %v158 = vld [vmem:[#allocation3 + $0x110] sm:$0xff]
    %v159 = vld [vmem:[#allocation3 + $0x118] sm:$0xff]
    %v160 = vld [vmem:[#allocation3 + $0x120] sm:$0xff]
    %v161 = vld [vmem:[#allocation3 + $0x128] sm:$0xff]
    %v162 = vld [vmem:[#allocation3 + $0x130] sm:$0xff]
    %v163 = vld [vmem:[#allocation3 + $0x138] sm:$0xff]
    %v164 = vld [vmem:[#allocation3 + $0x140] sm:$0xff]
    %v165 = vld [vmem:[#allocation3 + $0x148] sm:$0xff]
    %v166 = vld [vmem:[#allocation3 + $0x150] sm:$0xff]
    %v167 = vld [vmem:[#allocation3 + $0x158] sm:$0xff]
    %v168 = vld [vmem:[#allocation3 + $0x160] sm:$0xff]
    %v169 = vld [vmem:[#allocation3 + $0x168] sm:$0xff]
    %v170 = vld [vmem:[#allocation3 + $0x170] sm:$0xff]
    %v171 = vld [vmem:[#allocation3 + $0x178] sm:$0xff]
    %v172 = vld [vmem:[#allocation3 + $0x180] sm:$0xff]
    %v173 = vld [vmem:[#allocation3 + $0x188] sm:$0xff]
    %v174 = vld [vmem:[#allocation3 + $0x190] sm:$0xff]
    %v175 = vld [vmem:[#allocation3 + $0x198] sm:$0xff]
    %v176 = vld [vmem:[#allocation3 + $0x1a0] sm:$0xff]
    %v177 = vld [vmem:[#allocation3 + $0x1a8] sm:$0xff]
    %v178 = vld [vmem:[#allocation3 + $0x1b0] sm:$0xff]
    %v179 = vld [vmem:[#allocation3 + $0x1b8] sm:$0xff]
    %v180 = vld [vmem:[#allocation3 + $0x1c0] sm:$0xff]
    %v181 = vld [vmem:[#allocation3 + $0x1c8] sm:$0xff]
    %v182 = vld [vmem:[#allocation3 + $0x1d0] sm:$0xff]
    %v183 = vld [vmem:[#allocation3 + $0x1d8] sm:$0xff]
    %v184 = vld [vmem:[#allocation3 + $0x1e0] sm:$0xff]
    %v185 = vld [vmem:[#allocation3 + $0x1e8] sm:$0xff]
    %v186 = vld [vmem:[#allocation3 + $0x1f0] sm:$0xff]
    %v187 = vld [vmem:[#allocation3 + $0x1f8] sm:$0xff]
    %v188 = vld [vmem:[#allocation3 + $0x200] sm:$0xff]
    %v189 = vld [vmem:[#allocation3 + $0x208] sm:$0xff]
    %v190 = vld [vmem:[#allocation3 + $0x210] sm:$0xff]
    %v191 = vld [vmem:[#allocation3 + $0x218] sm:$0xff]
    %v192 = vld [vmem:[#allocation3 + $0x220] sm:$0xff]
    %v193 = vld [vmem:[#allocation3 + $0x228] sm:$0xff]
    %v194 = vld [vmem:[#allocation3 + $0x230] sm:$0xff]
    %v195 = vld [vmem:[#allocation3 + $0x238] sm:$0xff]
    %v196 = vld [vmem:[#allocation3 + $0x240] sm:$0xff]
    %v197 = vld [vmem:[#allocation3 + $0x248] sm:$0xff]
    %v198 = vld [vmem:[#allocation3 + $0x250] sm:$0xff]
    %v199 = vld [vmem:[#allocation3 + $0x258] sm:$0xff]
    %v200 = vld [vmem:[#allocation3 + $0x260] sm:$0xff]
    %v201 = vld [vmem:[#allocation3 + $0x268] sm:$0xff]
    %v202 = vld [vmem:[#allocation3 + $0x270] sm:$0xff]
    %v203 = vld [vmem:[#allocation3 + $0x278] sm:$0xff]
    %v204 = vld [vmem:[#allocation3 + $0x280] sm:$0xff]
    %v205 = vld [vmem:[#allocation3 + $0x288] sm:$0xff]
    %v206 = vld [vmem:[#allocation3 + $0x290] sm:$0xff]
    %v207 = vld [vmem:[#allocation3 + $0x298] sm:$0xff]
    %v208 = vld [vmem:[#allocation3 + $0x2a0] sm:$0xff]
    %v209 = vld [vmem:[#allocation3 + $0x2a8] sm:$0xff]
    %v210 = vld [vmem:[#allocation3 + $0x2b0] sm:$0xff]
    %v211 = vld [vmem:[#allocation3 + $0x2b8] sm:$0xff]
    %v212 = vld [vmem:[#allocation3 + $0x2c0] sm:$0xff]
    %v213 = vld [vmem:[#allocation3 + $0x2c8] sm:$0xff]
    %v214 = vld [vmem:[#allocation3 + $0x2d0] sm:$0xff]
    %v215 = vld [vmem:[#allocation3 + $0x2d8] sm:$0xff]
    %v216 = vld [vmem:[#allocation3 + $0x2e0] sm:$0xff]
    %v217 = vld [vmem:[#allocation3 + $0x2e8] sm:$0xff]
    %v218 = vld [vmem:[#allocation3 + $0x2f0] sm:$0xff]
    %v219 = vld [vmem:[#allocation3 + $0x2f8] sm:$0xff]
    %v220 = vld [vmem:[%s3] sm:$0x3f]
    %v222 = vperm.slane %v220, 0
    %v223 = vperm.slane %v220, 1
    %v224 = vperm.slane %v220, 2
    %v225 = vperm.slane %v220, 3
    %v226 = vperm.slane %v220, 4
    %v227 = vperm.slane %v220, 5
    %234 = vmatpush.msra.mxu0 %v214
    %235 = vmatpush.msra.mxu0 %v208
    %236 = vmatpush.msra.mxu0 %v202
    %237 = vmatpush.msra.mxu0 %v196
    %238 = vmatpush.msra.mxu0 %v190
    %239 = vmatpush.msra.mxu0 %v184
    %240 = vmatpush.msra.mxu0 %v178
    %241 = vmatpush.msra.mxu0 %v172
    %242 = vmatpush.msra.mxu0 %v166
    %243 = vmatpush.msra.mxu0 %v160
    %244 = vmatpush.msra.mxu0 %v154
    %245 = vmatpush.msra.mxu0 %v148
    %246 = vmatpush.msra.mxu0 %v142
    %247 = vmatpush.msra.mxu0 %v136
    %248 = vmatpush.msra.mxu0 %v130
    %249 = vmatpush.msra.mxu0 %v124
    %250 = vmatmul.f32.gmra.mxu0 %v122
    %v251 = vpop.f32.mrf.mxu0
    %v252 = vadd.f32 %v222, %v251
    %253 = vmatmul.f32.gmra.mxu0 %v123
    %v254 = vpop.f32.mrf.mxu0
    %v255 = vadd.f32 %v222, %v254
    %256 = vdwg.mxu0
    %257 = vmatpush.msra.mxu0 %v215
    %258 = vmatpush.msra.mxu0 %v209
    %259 = vmatpush.msra.mxu0 %v203
    %260 = vmatpush.msra.mxu0 %v197
    %261 = vmatpush.msra.mxu0 %v191
    %262 = vmatpush.msra.mxu0 %v185
    %263 = vmatpush.msra.mxu0 %v179
    %264 = vmatpush.msra.mxu0 %v173
    %265 = vmatpush.msra.mxu0 %v167
    %266 = vmatpush.msra.mxu0 %v161
    %267 = vmatpush.msra.mxu0 %v155
    %268 = vmatpush.msra.mxu0 %v149
    %269 = vmatpush.msra.mxu0 %v143
    %270 = vmatpush.msra.mxu0 %v137
    %271 = vmatpush.msra.mxu0 %v131
    %272 = vmatpush.msra.mxu0 %v125
    %273 = vmatmul.f32.gmra.mxu0 %v122
    %v274 = vpop.f32.mrf.mxu0
    %v275 = vadd.f32 %v223, %v274
    %276 = vmatmul.f32.gmra.mxu0 %v123
    %v277 = vpop.f32.mrf.mxu0
    %v278 = vadd.f32 %v223, %v277
    %279 = vdwg.mxu0
    %280 = vmatpush.msra.mxu0 %v216
    %281 = vmatpush.msra.mxu0 %v210
    %282 = vmatpush.msra.mxu0 %v204
    %283 = vmatpush.msra.mxu0 %v198
    %284 = vmatpush.msra.mxu0 %v192
    %285 = vmatpush.msra.mxu0 %v186
    %286 = vmatpush.msra.mxu0 %v180
    %287 = vmatpush.msra.mxu0 %v174
    %288 = vmatpush.msra.mxu0 %v168
    %289 = vmatpush.msra.mxu0 %v162
    %290 = vmatpush.msra.mxu0 %v156
    %291 = vmatpush.msra.mxu0 %v150
    %292 = vmatpush.msra.mxu0 %v144
    %293 = vmatpush.msra.mxu0 %v138
    %294 = vmatpush.msra.mxu0 %v132
    %295 = vmatpush.msra.mxu0 %v126
    %296 = vmatmul.f32.gmra.mxu0 %v122
    %v297 = vpop.f32.mrf.mxu0
    %v298 = vadd.f32 %v224, %v297
    %299 = vmatmul.f32.gmra.mxu0 %v123
    %v300 = vpop.f32.mrf.mxu0
    %v301 = vadd.f32 %v224, %v300
    %302 = vdwg.mxu0
    %303 = vmatpush.msra.mxu0 %v217
    %304 = vmatpush.msra.mxu0 %v211
    %305 = vmatpush.msra.mxu0 %v205
    %306 = vmatpush.msra.mxu0 %v199
    %307 = vmatpush.msra.mxu0 %v193
    %308 = vmatpush.msra.mxu0 %v187
    %309 = vmatpush.msra.mxu0 %v181
    %310 = vmatpush.msra.mxu0 %v175
    %311 = vmatpush.msra.mxu0 %v169
    %312 = vmatpush.msra.mxu0 %v163
    %313 = vmatpush.msra.mxu0 %v157
    %314 = vmatpush.msra.mxu0 %v151
    %315 = vmatpush.msra.mxu0 %v145
    %316 = vmatpush.msra.mxu0 %v139
    %317 = vmatpush.msra.mxu0 %v133
    %318 = vmatpush.msra.mxu0 %v127
    %319 = vmatmul.f32.gmra.mxu0 %v122
    %v320 = vpop.f32.mrf.mxu0
    %v321 = vadd.f32 %v225, %v320
    %322 = vmatmul.f32.gmra.mxu0 %v123
    %v323 = vpop.f32.mrf.mxu0
    %v324 = vadd.f32 %v225, %v323
    %325 = vdwg.mxu0
    %326 = vmatpush.msra.mxu0 %v218
    %327 = vmatpush.msra.mxu0 %v212
    %328 = vmatpush.msra.mxu0 %v206
    %329 = vmatpush.msra.mxu0 %v200
    %330 = vmatpush.msra.mxu0 %v194
    %331 = vmatpush.msra.mxu0 %v188
    %332 = vmatpush.msra.mxu0 %v182
    %333 = vmatpush.msra.mxu0 %v176
    %334 = vmatpush.msra.mxu0 %v170
    %335 = vmatpush.msra.mxu0 %v164
    %336 = vmatpush.msra.mxu0 %v158
    %337 = vmatpush.msra.mxu0 %v152
    %338 = vmatpush.msra.mxu0 %v146
    %339 = vmatpush.msra.mxu0 %v140
    %340 = vmatpush.msra.mxu0 %v134
    %341 = vmatpush.msra.mxu0 %v128
    %342 = vmatmul.f32.gmra.mxu0 %v122
    %v343 = vpop.f32.mrf.mxu0
    %v344 = vadd.f32 %v226, %v343
    %345 = vmatmul.f32.gmra.mxu0 %v123
    %v346 = vpop.f32.mrf.mxu0
    %v347 = vadd.f32 %v226, %v346
    %348 = vdwg.mxu0
    %349 = vmatpush.msra.mxu0 %v219
    %350 = vmatpush.msra.mxu0 %v213
    %351 = vmatpush.msra.mxu0 %v207
    %352 = vmatpush.msra.mxu0 %v201
    %353 = vmatpush.msra.mxu0 %v195
    %354 = vmatpush.msra.mxu0 %v189
    %355 = vmatpush.msra.mxu0 %v183
    %356 = vmatpush.msra.mxu0 %v177
    %357 = vmatpush.msra.mxu0 %v171
    %358 = vmatpush.msra.mxu0 %v165
    %359 = vmatpush.msra.mxu0 %v159
    %360 = vmatpush.msra.mxu0 %v153
    %361 = vmatpush.msra.mxu0 %v147
    %362 = vmatpush.msra.mxu0 %v141
    %363 = vmatpush.msra.mxu0 %v135
    %364 = vmatpush.msra.mxu0 %v129
    %365 = vmatmul.f32.gmra.mxu0 %v122
    %v366 = vpop.f32.mrf.mxu0
    %v367 = vadd.f32 %v227, %v366
    %368 = vmatmul.f32.gmra.mxu0 %v123
    %v369 = vpop.f32.mrf.mxu0
    %v370 = vadd.f32 %v227, %v369
    %371 = vdwg.mxu0
    %v372 = vlaneseq
    %v373 = vshrl.u32 %v372, 7
    %v374 = vlaneseq
    %v375 = vand.u32 %v374, 127
    %vm376 = vcmp.le.s32.totalorder %v375, %v373
    %377 = vmatpush.xpose.msra.mxu0 0.0
    %378 = vmatpush.xpose.msra.mxu0 0.0
    %379 = vmatpush.xpose.msra.mxu0 0.0
    %380 = vmatpush.xpose.msra.mxu0 0.0
    %381 = vmatpush.xpose.msra.mxu0 0.0
    %382 = vmatpush.xpose.msra.mxu0 0.0
    %383 = vmatpush.xpose.msra.mxu0 0.0
    %384 = vmatpush.xpose.msra.mxu0 0.0
    %385 = vmatpush.xpose.msra.mxu0 0.0
    %386 = vmatpush.xpose.msra.mxu0 0.0
    %387 = vmatpush.xpose.msra.mxu0 0.0
    %388 = vmatpush.xpose.msra.mxu0 0.0
    %389 = vmatpush.xpose.msra.mxu0 0.0
    %390 = vmatpush.xpose.msra.mxu0 0.0
    %391 = vmatpush.xpose.msra.mxu0 0.0
    %392 = vmatpush.xpose.msra.mxu0 %v298
    %393 = vmatmul.f32.gmra.mxu0 %v252
    %v394 = vpop.f32.mrf.mxu0
    %v395 = vadd.f32 0.0, %v394
    %396 = vdwg.mxu0
    %v397 = vsel %vm376, %v395, -1e+30
    %vm398 = vcmask 64512
    %v399 = vsel %vm398, %v397, -inf
    %400 = vmax.xlane.f32.xlu0 %v399
    %v401 = vpop.xlane.xlu0 %400
    %v402 = vsub.f32 %v397, %v401
    %v403 = vmul.f32 %v402, 1.442695
    %v404 = vpow.pop %v403
    %v405 = vsel %vm398, %v404, 0.0
    %406 = vadd.xlane.f32.xlu0 %v405
    %v407 = vpop.xlane.xlu0 %406
    %v408 = vrcp.pop %v407
    %v409 = vmul.f32 %v404, %v408
    %v411 = vsel %vm398, %v409, 0
    %413 = vmatpush.msra.mxu0 0.0
    %414 = vmatpush.msra.mxu0 0.0
    %415 = vmatpush.msra.mxu0 0.0
    %416 = vmatpush.msra.mxu0 0.0
    %417 = vmatpush.msra.mxu0 0.0
    %418 = vmatpush.msra.mxu0 0.0
    %419 = vmatpush.msra.mxu0 0.0
    %420 = vmatpush.msra.mxu0 0.0
    %421 = vmatpush.msra.mxu0 0.0
    %422 = vmatpush.msra.mxu0 0.0
    %423 = vmatpush.msra.mxu0 0.0
    %424 = vmatpush.msra.mxu0 0.0
    %425 = vmatpush.msra.mxu0 0.0
    %426 = vmatpush.msra.mxu0 0.0
    %427 = vmatpush.msra.mxu0 0.0
    %428 = vmatpush.msra.mxu0 %v344
    %429 = vmatmul.f32.gmra.mxu0 %v411
    %v430 = vpop.f32.mrf.mxu0
    %v431 = vadd.f32 0.0, %v430
    %432 = vdwg.mxu0
    %433 = vmatpush.xpose.msra.mxu0 0.0
    %434 = vmatpush.xpose.msra.mxu0 0.0
    %435 = vmatpush.xpose.msra.mxu0 0.0
    %436 = vmatpush.xpose.msra.mxu0 0.0
    %437 = vmatpush.xpose.msra.mxu0 0.0
    %438 = vmatpush.xpose.msra.mxu0 0.0
    %439 = vmatpush.xpose.msra.mxu0 0.0
    %440 = vmatpush.xpose.msra.mxu0 0.0
    %441 = vmatpush.xpose.msra.mxu0 0.0
    %442 = vmatpush.xpose.msra.mxu0 0.0
    %443 = vmatpush.xpose.msra.mxu0 0.0
    %444 = vmatpush.xpose.msra.mxu0 0.0
    %445 = vmatpush.xpose.msra.mxu0 0.0
    %446 = vmatpush.xpose.msra.mxu0 0.0
    %447 = vmatpush.xpose.msra.mxu0 0.0
    %448 = vmatpush.xpose.msra.mxu0 %v321
    %449 = vmatmul.f32.gmra.mxu0 %v275
    %v450 = vpop.f32.mrf.mxu0
    %v451 = vadd.f32 0.0, %v450
    %452 = vdwg.mxu0
    %v453 = vsel %vm376, %v451, -1e+30
    %v454 = vsel %vm398, %v453, -inf
    %455 = vmax.xlane.f32.xlu0 %v454
    %v456 = vpop.xlane.xlu0 %455
    %v457 = vsub.f32 %v453, %v456
    %v458 = vmul.f32 %v457, 1.442695
    %v459 = vpow.pop %v458
    %v460 = vsel %vm398, %v459, 0.0
    %461 = vadd.xlane.f32.xlu0 %v460
    %v462 = vpop.xlane.xlu0 %461
    %v463 = vrcp.pop %v462
    %v464 = vmul.f32 %v459, %v463
    %v466 = vsel %vm398, %v464, 0
    %468 = vmatpush.msra.mxu0 0.0
    %469 = vmatpush.msra.mxu0 0.0
    %470 = vmatpush.msra.mxu0 0.0
    %471 = vmatpush.msra.mxu0 0.0
    %472 = vmatpush.msra.mxu0 0.0
    %473 = vmatpush.msra.mxu0 0.0
    %474 = vmatpush.msra.mxu0 0.0
    %475 = vmatpush.msra.mxu0 0.0
    %476 = vmatpush.msra.mxu0 0.0
    %477 = vmatpush.msra.mxu0 0.0
    %478 = vmatpush.msra.mxu0 0.0
    %479 = vmatpush.msra.mxu0 0.0
    %480 = vmatpush.msra.mxu0 0.0
    %481 = vmatpush.msra.mxu0 0.0
    %482 = vmatpush.msra.mxu0 0.0
    %483 = vmatpush.msra.mxu0 %v367
    %484 = vmatmul.f32.gmra.mxu0 %v466
    %v485 = vpop.f32.mrf.mxu0
    %v486 = vadd.f32 0.0, %v485
    %487 = vdwg.mxu0
    %488 = vmatpush.xpose.msra.mxu0 0.0
    %489 = vmatpush.xpose.msra.mxu0 0.0
    %490 = vmatpush.xpose.msra.mxu0 0.0
    %491 = vmatpush.xpose.msra.mxu0 0.0
    %492 = vmatpush.xpose.msra.mxu0 0.0
    %493 = vmatpush.xpose.msra.mxu0 0.0
    %494 = vmatpush.xpose.msra.mxu0 0.0
    %495 = vmatpush.xpose.msra.mxu0 0.0
    %496 = vmatpush.xpose.msra.mxu0 0.0
    %497 = vmatpush.xpose.msra.mxu0 0.0
    %498 = vmatpush.xpose.msra.mxu0 0.0
    %499 = vmatpush.xpose.msra.mxu0 0.0
    %500 = vmatpush.xpose.msra.mxu0 0.0
    %501 = vmatpush.xpose.msra.mxu0 0.0
    %502 = vmatpush.xpose.msra.mxu0 0.0
    %503 = vmatpush.xpose.msra.mxu0 %v301
    %504 = vmatmul.f32.gmra.mxu0 %v255
    %v505 = vpop.f32.mrf.mxu0
    %v506 = vadd.f32 0.0, %v505
    %507 = vdwg.mxu0
    %v508 = vsel %vm376, %v506, -1e+30
    %v509 = vsel %vm398, %v508, -inf
    %510 = vmax.xlane.f32.xlu0 %v509
    %v511 = vpop.xlane.xlu0 %510
    %v512 = vsub.f32 %v508, %v511
    %v513 = vmul.f32 %v512, 1.442695
    %v514 = vpow.pop %v513
    %v515 = vsel %vm398, %v514, 0.0
    %516 = vadd.xlane.f32.xlu0 %v515
    %v517 = vpop.xlane.xlu0 %516
    %v518 = vrcp.pop %v517
    %v519 = vmul.f32 %v514, %v518
    %v521 = vsel %vm398, %v519, 0
    %523 = vmatpush.msra.mxu0 0.0
    %524 = vmatpush.msra.mxu0 0.0
    %525 = vmatpush.msra.mxu0 0.0
    %526 = vmatpush.msra.mxu0 0.0
    %527 = vmatpush.msra.mxu0 0.0
    %528 = vmatpush.msra.mxu0 0.0
    %529 = vmatpush.msra.mxu0 0.0
    %530 = vmatpush.msra.mxu0 0.0
    %531 = vmatpush.msra.mxu0 0.0
    %532 = vmatpush.msra.mxu0 0.0
    %533 = vmatpush.msra.mxu0 0.0
    %534 = vmatpush.msra.mxu0 0.0
    %535 = vmatpush.msra.mxu0 0.0
    %536 = vmatpush.msra.mxu0 0.0
    %537 = vmatpush.msra.mxu0 0.0
    %538 = vmatpush.msra.mxu0 %v347
    %539 = vmatmul.f32.gmra.mxu0 %v521
    %v540 = vpop.f32.mrf.mxu0
    %v541 = vadd.f32 0.0, %v540
    %542 = vdwg.mxu0
    %543 = vmatpush.xpose.msra.mxu0 0.0
    %544 = vmatpush.xpose.msra.mxu0 0.0
    %545 = vmatpush.xpose.msra.mxu0 0.0
    %546 = vmatpush.xpose.msra.mxu0 0.0
    %547 = vmatpush.xpose.msra.mxu0 0.0
    %548 = vmatpush.xpose.msra.mxu0 0.0
    %549 = vmatpush.xpose.msra.mxu0 0.0
    %550 = vmatpush.xpose.msra.mxu0 0.0
    %551 = vmatpush.xpose.msra.mxu0 0.0
    %552 = vmatpush.xpose.msra.mxu0 0.0
    %553 = vmatpush.xpose.msra.mxu0 0.0
    %554 = vmatpush.xpose.msra.mxu0 0.0
    %555 = vmatpush.xpose.msra.mxu0 0.0
    %556 = vmatpush.xpose.msra.mxu0 0.0
    %557 = vmatpush.xpose.msra.mxu0 0.0
    %558 = vmatpush.xpose.msra.mxu0 %v324
    %559 = vmatmul.f32.gmra.mxu0 %v278
    %v560 = vpop.f32.mrf.mxu0
    %v561 = vadd.f32 0.0, %v560
    %562 = vdwg.mxu0
    %v563 = vsel %vm376, %v561, -1e+30
    %v564 = vsel %vm398, %v563, -inf
    %565 = vmax.xlane.f32.xlu0 %v564
    %v566 = vpop.xlane.xlu0 %565
    %v567 = vsub.f32 %v563, %v566
    %v568 = vmul.f32 %v567, 1.442695
    %v569 = vpow.pop %v568
    %v570 = vsel %vm398, %v569, 0.0
    %571 = vadd.xlane.f32.xlu0 %v570
    %v572 = vpop.xlane.xlu0 %571
    %v573 = vrcp.pop %v572
    %v574 = vmul.f32 %v569, %v573
    %v576 = vsel %vm398, %v574, 0
    %578 = vmatpush.msra.mxu0 0.0
    %579 = vmatpush.msra.mxu0 0.0
    %580 = vmatpush.msra.mxu0 0.0
    %581 = vmatpush.msra.mxu0 0.0
    %582 = vmatpush.msra.mxu0 0.0
    %583 = vmatpush.msra.mxu0 0.0
    %584 = vmatpush.msra.mxu0 0.0
    %585 = vmatpush.msra.mxu0 0.0
    %586 = vmatpush.msra.mxu0 0.0
    %587 = vmatpush.msra.mxu0 0.0
    %588 = vmatpush.msra.mxu0 0.0
    %589 = vmatpush.msra.mxu0 0.0
    %590 = vmatpush.msra.mxu0 0.0
    %591 = vmatpush.msra.mxu0 0.0
    %592 = vmatpush.msra.mxu0 0.0
    %593 = vmatpush.msra.mxu0 %v370
    %594 = vmatmul.f32.gmra.mxu0 %v576
    %v595 = vpop.f32.mrf.mxu0
    %v596 = vadd.f32 0.0, %v595
    %597 = vdwg.mxu0
    %v598 = vld [vmem:[#allocation5] sm:$0xff]
    %v599 = vld [vmem:[#allocation5 + $0x8] sm:$0xff]
    %v600 = vld [vmem:[#allocation5 + $0x10] sm:$0xff]
    %v601 = vld [vmem:[#allocation5 + $0x18] sm:$0xff]
    %v602 = vld [vmem:[#allocation5 + $0x20] sm:$0xff]
    %v603 = vld [vmem:[#allocation5 + $0x28] sm:$0xff]
    %v604 = vld [vmem:[#allocation5 + $0x30] sm:$0xff]
    %v605 = vld [vmem:[#allocation5 + $0x38] sm:$0xff]
    %v606 = vld [vmem:[#allocation5 + $0x40] sm:$0xff]
    %v607 = vld [vmem:[#allocation5 + $0x48] sm:$0xff]
    %v608 = vld [vmem:[#allocation5 + $0x50] sm:$0xff]
    %v609 = vld [vmem:[#allocation5 + $0x58] sm:$0xff]
    %v610 = vld [vmem:[#allocation5 + $0x60] sm:$0xff]
    %v611 = vld [vmem:[#allocation5 + $0x68] sm:$0xff]
    %v612 = vld [vmem:[#allocation5 + $0x70] sm:$0xff]
    %v613 = vld [vmem:[#allocation5 + $0x78] sm:$0xff]
    %v614 = vld [vmem:[#allocation5 + $0x80] sm:$0xff]
    %v615 = vld [vmem:[#allocation5 + $0x88] sm:$0xff]
    %v616 = vld [vmem:[#allocation5 + $0x90] sm:$0xff]
    %v617 = vld [vmem:[#allocation5 + $0x98] sm:$0xff]
    %v618 = vld [vmem:[#allocation5 + $0xa0] sm:$0xff]
    %v619 = vld [vmem:[#allocation5 + $0xa8] sm:$0xff]
    %v620 = vld [vmem:[#allocation5 + $0xb0] sm:$0xff]
    %v621 = vld [vmem:[#allocation5 + $0xb8] sm:$0xff]
    %v622 = vld [vmem:[#allocation5 + $0xc0] sm:$0xff]
    %v623 = vld [vmem:[#allocation5 + $0xc8] sm:$0xff]
    %v624 = vld [vmem:[#allocation5 + $0xd0] sm:$0xff]
    %v625 = vld [vmem:[#allocation5 + $0xd8] sm:$0xff]
    %v626 = vld [vmem:[#allocation5 + $0xe0] sm:$0xff]
    %v627 = vld [vmem:[#allocation5 + $0xe8] sm:$0xff]
    %v628 = vld [vmem:[#allocation5 + $0xf0] sm:$0xff]
    %v629 = vld [vmem:[#allocation5 + $0xf8] sm:$0xff]
    %v630 = vld [vmem:[%s5] sm:$0x1]
    %v632 = vperm.slane %v630, 0
    %634 = vmatpush.msra.mxu0 %v613
    %635 = vmatpush.msra.mxu0 %v612
    %636 = vmatpush.msra.mxu0 %v611
    %637 = vmatpush.msra.mxu0 %v610
    %638 = vmatpush.msra.mxu0 %v609
    %639 = vmatpush.msra.mxu0 %v608
    %640 = vmatpush.msra.mxu0 %v607
    %641 = vmatpush.msra.mxu0 %v606
    %642 = vmatpush.msra.mxu0 %v605
    %643 = vmatpush.msra.mxu0 %v604
    %644 = vmatpush.msra.mxu0 %v603
    %645 = vmatpush.msra.mxu0 %v602
    %646 = vmatpush.msra.mxu0 %v601
    %647 = vmatpush.msra.mxu0 %v600
    %648 = vmatpush.msra.mxu0 %v599
    %649 = vmatpush.msra.mxu0 %v598
    %650 = vmatmul.f32.gmra.mxu0 %v431
    %v651 = vpop.f32.mrf.mxu0
    %v652 = vadd.f32 %v632, %v651
    %653 = vmatmul.f32.gmra.mxu0 %v541
    %v654 = vpop.f32.mrf.mxu0
    %v655 = vadd.f32 %v632, %v654
    %656 = vdwg.mxu0
    %657 = vmatpush.msra.mxu0 %v629
    %658 = vmatpush.msra.mxu0 %v628
    %659 = vmatpush.msra.mxu0 %v627
    %660 = vmatpush.msra.mxu0 %v626
    %661 = vmatpush.msra.mxu0 %v625
    %662 = vmatpush.msra.mxu0 %v624
    %663 = vmatpush.msra.mxu0 %v623
    %664 = vmatpush.msra.mxu0 %v622
    %665 = vmatpush.msra.mxu0 %v621
    %666 = vmatpush.msra.mxu0 %v620
    %667 = vmatpush.msra.mxu0 %v619
    %668 = vmatpush.msra.mxu0 %v618
    %669 = vmatpush.msra.mxu0 %v617
    %670 = vmatpush.msra.mxu0 %v616
    %671 = vmatpush.msra.mxu0 %v615
    %672 = vmatpush.msra.mxu0 %v614
    %673 = vmatmul.f32.gmra.mxu0 %v486
    %v674 = vpop.f32.mrf.mxu0
    %v675 = vadd.f32 %v652, %v674
    %676 = vmatmul.f32.gmra.mxu0 %v596
    %v677 = vpop.f32.mrf.mxu0
    %v678 = vadd.f32 %v655, %v677
    %679 = vdwg.mxu0
    %v680 = vadd.f32 %v122, %v675
    %v681 = vadd.f32 %v123, %v678
    %v682 = vld [vmem:[%s6] sm:$0x1]
    %v683 = vld [vmem:[%s7] sm:$0x1]
    %684 = vadd.xlane.f32.xlu0 %v680
    %v685 = vpop.xlane.xlu0 %684
    %686 = vadd.xlane.f32.xlu0 %v681
    %v687 = vpop.xlane.xlu0 %686
    %v688 = vrcp.pop 128.0
    %v689 = vmul.f32 128.0, %v688
    %v690 = vsub.f32 1.0, %v689
    %v691 = vmul.f32 %v688, %v690
    %v692 = vadd.f32 %v688, %v691
    %vm693 = vweird.f32 %v688
    %v694 = vsel %vm693, %v688, %v692
    %v695 = vmul.f32 %v685, %v694
    %v696 = vmul.f32 %v687, %v694
    %v697 = vsub.f32 %v680, %v695
    %v698 = vsub.f32 %v681, %v696
    %v699 = vmul.f32 %v697, %v697
    %v700 = vmul.f32 %v698, %v698
    %701 = vadd.xlane.f32.xlu0 %v699
    %v702 = vpop.xlane.xlu0 %701
    %703 = vadd.xlane.f32.xlu0 %v700
    %v704 = vpop.xlane.xlu0 %703
    %v705 = vmul.f32 %v702, %v694
    %v706 = vmul.f32 %v704, %v694
    %v707 = vadd.f32 %v705, 1e-05
    %v708 = vadd.f32 %v706, 1e-05
    %v709 = vrsqrt.pop %v707
    %v710 = vmul.f32 %v709, %v707
    %v711 = vmul.f32 %v710, %v709
    %v712 = vmul.f32 0.5, %v711
    %v713 = vsub.f32 1.5, %v712
    %v714 = vmul.f32 %v709, %v713
    %vm715 = vweird.f32 %v707
    %vm716 = vweird.f32 %v709
    %vm717 = vmor %vm715, %vm716
    %v718 = vsel %vm717, %v709, %v714
    %v719 = vrsqrt.pop %v708
    %v720 = vmul.f32 %v719, %v708
    %v721 = vmul.f32 %v720, %v719
    %v722 = vmul.f32 0.5, %v721
    %v723 = vsub.f32 1.5, %v722
    %v724 = vmul.f32 %v719, %v723
    %vm725 = vweird.f32 %v708
    %vm726 = vweird.f32 %v719
    %vm727 = vmor %vm725, %vm726
    %v728 = vsel %vm727, %v719, %v724
    %v729 = vmul.f32 %v697, %v718
    %v730 = vmul.f32 %v698, %v728
    %v732 = vperm.slane %v682, 0
    %v734 = vmul.f32 %v729, %v732
    %v735 = vmul.f32 %v730, %v732
    %v737 = vperm.slane %v683, 0
    %v739 = vadd.f32 %v734, %v737
    %v740 = vadd.f32 %v735, %v737
    %v741 = vld [vmem:[#allocation7] sm:$0xff]
    %v742 = vld [vmem:[#allocation7 + $0x8] sm:$0xff]
    %v743 = vld [vmem:[#allocation7 + $0x10] sm:$0xff]
    %v744 = vld [vmem:[#allocation7 + $0x18] sm:$0xff]
    %v745 = vld [vmem:[#allocation7 + $0x20] sm:$0xff]
    %v746 = vld [vmem:[#allocation7 + $0x28] sm:$0xff]
    %v747 = vld [vmem:[#allocation7 + $0x30] sm:$0xff]
    %v748 = vld [vmem:[#allocation7 + $0x38] sm:$0xff]
    %v749 = vld [vmem:[#allocation7 + $0x40] sm:$0xff]
    %v750 = vld [vmem:[#allocation7 + $0x48] sm:$0xff]
    %v751 = vld [vmem:[#allocation7 + $0x50] sm:$0xff]
    %v752 = vld [vmem:[#allocation7 + $0x58] sm:$0xff]
    %v753 = vld [vmem:[#allocation7 + $0x60] sm:$0xff]
    %v754 = vld [vmem:[#allocation7 + $0x68] sm:$0xff]
    %v755 = vld [vmem:[#allocation7 + $0x70] sm:$0xff]
    %v756 = vld [vmem:[#allocation7 + $0x78] sm:$0xff]
    %v757 = vld [vmem:[#allocation7 + $0x80] sm:$0xff]
    %v758 = vld [vmem:[#allocation7 + $0x88] sm:$0xff]
    %v759 = vld [vmem:[#allocation7 + $0x90] sm:$0xff]
    %v760 = vld [vmem:[#allocation7 + $0x98] sm:$0xff]
    %v761 = vld [vmem:[#allocation7 + $0xa0] sm:$0xff]
    %v762 = vld [vmem:[#allocation7 + $0xa8] sm:$0xff]
    %v763 = vld [vmem:[#allocation7 + $0xb0] sm:$0xff]
    %v764 = vld [vmem:[#allocation7 + $0xb8] sm:$0xff]
    %v765 = vld [vmem:[#allocation7 + $0xc0] sm:$0xff]
    %v766 = vld [vmem:[#allocation7 + $0xc8] sm:$0xff]
    %v767 = vld [vmem:[#allocation7 + $0xd0] sm:$0xff]
    %v768 = vld [vmem:[#allocation7 + $0xd8] sm:$0xff]
    %v769 = vld [vmem:[#allocation7 + $0xe0] sm:$0xff]
    %v770 = vld [vmem:[#allocation7 + $0xe8] sm:$0xff]
    %v771 = vld [vmem:[#allocation7 + $0xf0] sm:$0xff]
    %v772 = vld [vmem:[#allocation7 + $0xf8] sm:$0xff]
    %v773 = vld [vmem:[%s9] sm:$0x3]
    %v775 = vperm.slane %v773, 0
    %v776 = vperm.slane %v773, 1
    %779 = vmatpush.msra.mxu0 %v771
    %780 = vmatpush.msra.mxu0 %v769
    %781 = vmatpush.msra.mxu0 %v767
    %782 = vmatpush.msra.mxu0 %v765
    %783 = vmatpush.msra.mxu0 %v763
    %784 = vmatpush.msra.mxu0 %v761
    %785 = vmatpush.msra.mxu0 %v759
    %786 = vmatpush.msra.mxu0 %v757
    %787 = vmatpush.msra.mxu0 %v755
    %788 = vmatpush.msra.mxu0 %v753
    %789 = vmatpush.msra.mxu0 %v751
    %790 = vmatpush.msra.mxu0 %v749
    %791 = vmatpush.msra.mxu0 %v747
    %792 = vmatpush.msra.mxu0 %v745
    %793 = vmatpush.msra.mxu0 %v743
    %794 = vmatpush.msra.mxu0 %v741
    %795 = vmatmul.f32.gmra.mxu0 %v739
    %v796 = vpop.f32.mrf.mxu0
    %v797 = vadd.f32 %v775, %v796
    %798 = vmatmul.f32.gmra.mxu0 %v740
    %v799 = vpop.f32.mrf.mxu0
    %v800 = vadd.f32 %v775, %v799
    %801 = vdwg.mxu0
    %802 = vmatpush.msra.mxu0 %v772
    %803 = vmatpush.msra.mxu0 %v770
    %804 = vmatpush.msra.mxu0 %v768
    %805 = vmatpush.msra.mxu0 %v766
    %806 = vmatpush.msra.mxu0 %v764
    %807 = vmatpush.msra.mxu0 %v762
    %808 = vmatpush.msra.mxu0 %v760
    %809 = vmatpush.msra.mxu0 %v758
    %810 = vmatpush.msra.mxu0 %v756
    %811 = vmatpush.msra.mxu0 %v754
    %812 = vmatpush.msra.mxu0 %v752
    %813 = vmatpush.msra.mxu0 %v750
    %814 = vmatpush.msra.mxu0 %v748
    %815 = vmatpush.msra.mxu0 %v746
    %816 = vmatpush.msra.mxu0 %v744
    %817 = vmatpush.msra.mxu0 %v742
    %818 = vmatmul.f32.gmra.mxu0 %v739
    %v819 = vpop.f32.mrf.mxu0
    %v820 = vadd.f32 %v776, %v819
    %821 = vmatmul.f32.gmra.mxu0 %v740
    %v822 = vpop.f32.mrf.mxu0
    %v823 = vadd.f32 %v776, %v822
    %824 = vdwg.mxu0
    %v825 = vmax.f32 %v797, 0.0
    %v826 = vmax.f32 %v820, 0.0
    %v827 = vmax.f32 %v800, 0.0
    %v828 = vmax.f32 %v823, 0.0
    %v829 = vld [vmem:[#allocation8] sm:$0xff]
    %v830 = vld [vmem:[#allocation8 + $0x8] sm:$0xff]
    %v831 = vld [vmem:[#allocation8 + $0x10] sm:$0xff]
    %v832 = vld [vmem:[#allocation8 + $0x18] sm:$0xff]
    %v833 = vld [vmem:[#allocation8 + $0x20] sm:$0xff]
    %v834 = vld [vmem:[#allocation8 + $0x28] sm:$0xff]
    %v835 = vld [vmem:[#allocation8 + $0x30] sm:$0xff]
    %v836 = vld [vmem:[#allocation8 + $0x38] sm:$0xff]
    %v837 = vld [vmem:[#allocation8 + $0x40] sm:$0xff]
    %v838 = vld [vmem:[#allocation8 + $0x48] sm:$0xff]
    %v839 = vld [vmem:[#allocation8 + $0x50] sm:$0xff]
    %v840 = vld [vmem:[#allocation8 + $0x58] sm:$0xff]
    %v841 = vld [vmem:[#allocation8 + $0x60] sm:$0xff]
    %v842 = vld [vmem:[#allocation8 + $0x68] sm:$0xff]
    %v843 = vld [vmem:[#allocation8 + $0x70] sm:$0xff]
    %v844 = vld [vmem:[#allocation8 + $0x78] sm:$0xff]
    %v845 = vld [vmem:[#allocation8 + $0x80] sm:$0xff]
    %v846 = vld [vmem:[#allocation8 + $0x88] sm:$0xff]
    %v847 = vld [vmem:[#allocation8 + $0x90] sm:$0xff]
    %v848 = vld [vmem:[#allocation8 + $0x98] sm:$0xff]
    %v849 = vld [vmem:[#allocation8 + $0xa0] sm:$0xff]
    %v850 = vld [vmem:[#allocation8 + $0xa8] sm:$0xff]
    %v851 = vld [vmem:[#allocation8 + $0xb0] sm:$0xff]
    %v852 = vld [vmem:[#allocation8 + $0xb8] sm:$0xff]
    %v853 = vld [vmem:[#allocation8 + $0xc0] sm:$0xff]
    %v854 = vld [vmem:[#allocation8 + $0xc8] sm:$0xff]
    %v855 = vld [vmem:[#allocation8 + $0xd0] sm:$0xff]
    %v856 = vld [vmem:[#allocation8 + $0xd8] sm:$0xff]
    %v857 = vld [vmem:[#allocation8 + $0xe0] sm:$0xff]
    %v858 = vld [vmem:[#allocation8 + $0xe8] sm:$0xff]
    %v859 = vld [vmem:[#allocation8 + $0xf0] sm:$0xff]
    %v860 = vld [vmem:[#allocation8 + $0xf8] sm:$0xff]
    %v861 = vld [vmem:[%s11] sm:$0x1]
    %v863 = vperm.slane %v861, 0
    %865 = vmatpush.msra.mxu0 %v844
    %866 = vmatpush.msra.mxu0 %v843
    %867 = vmatpush.msra.mxu0 %v842
    %868 = vmatpush.msra.mxu0 %v841
    %869 = vmatpush.msra.mxu0 %v840
    %870 = vmatpush.msra.mxu0 %v839
    %871 = vmatpush.msra.mxu0 %v838
    %872 = vmatpush.msra.mxu0 %v837
    %873 = vmatpush.msra.mxu0 %v836
    %874 = vmatpush.msra.mxu0 %v835
    %875 = vmatpush.msra.mxu0 %v834
    %876 = vmatpush.msra.mxu0 %v833
    %877 = vmatpush.msra.mxu0 %v832
    %878 = vmatpush.msra.mxu0 %v831
    %879 = vmatpush.msra.mxu0 %v830
    %880 = vmatpush.msra.mxu0 %v829
    %881 = vmatmul.f32.gmra.mxu0 %v825
    %v882 = vpop.f32.mrf.mxu0
    %v883 = vadd.f32 %v863, %v882
    %884 = vmatmul.f32.gmra.mxu0 %v827
    %v885 = vpop.f32.mrf.mxu0
    %v886 = vadd.f32 %v863, %v885
    %887 = vdwg.mxu0
    %888 = vmatpush.msra.mxu0 %v860
    %889 = vmatpush.msra.mxu0 %v859
    %890 = vmatpush.msra.mxu0 %v858
    %891 = vmatpush.msra.mxu0 %v857
    %892 = vmatpush.msra.mxu0 %v856
    %893 = vmatpush.msra.mxu0 %v855
    %894 = vmatpush.msra.mxu0 %v854
    %895 = vmatpush.msra.mxu0 %v853
    %896 = vmatpush.msra.mxu0 %v852
    %897 = vmatpush.msra.mxu0 %v851
    %898 = vmatpush.msra.mxu0 %v850
    %899 = vmatpush.msra.mxu0 %v849
    %900 = vmatpush.msra.mxu0 %v848
    %901 = vmatpush.msra.mxu0 %v847
    %902 = vmatpush.msra.mxu0 %v846
    %903 = vmatpush.msra.mxu0 %v845
    %904 = vmatmul.f32.gmra.mxu0 %v826
    %v905 = vpop.f32.mrf.mxu0
    %v906 = vadd.f32 %v883, %v905
    %907 = vmatmul.f32.gmra.mxu0 %v828
    %v908 = vpop.f32.mrf.mxu0
    %v909 = vadd.f32 %v886, %v908
    %910 = vdwg.mxu0
    %v911 = vadd.f32 %v739, %v906
    %v912 = vadd.f32 %v740, %v909
    %v913 = vld [vmem:[%s12] sm:$0x1]
    %v914 = vld [vmem:[%s13] sm:$0x1]
    %915 = vadd.xlane.f32.xlu0 %v911
    %v916 = vpop.xlane.xlu0 %915
    %917 = vadd.xlane.f32.xlu0 %v912
    %v918 = vpop.xlane.xlu0 %917
    %v919 = vmul.f32 %v916, %v694
    %v920 = vmul.f32 %v918, %v694
    %v921 = vsub.f32 %v911, %v919
    %v922 = vsub.f32 %v912, %v920
    %v923 = vmul.f32 %v921, %v921
    %v924 = vmul.f32 %v922, %v922
    %925 = vadd.xlane.f32.xlu0 %v923
    %v926 = vpop.xlane.xlu0 %925
    %927 = vadd.xlane.f32.xlu0 %v924
    %v928 = vpop.xlane.xlu0 %927
    %v929 = vmul.f32 %v926, %v694
    %v930 = vmul.f32 %v928, %v694
    %v931 = vadd.f32 %v929, 1e-05
    %v932 = vadd.f32 %v930, 1e-05
    %v933 = vrsqrt.pop %v931
    %v934 = vmul.f32 %v933, %v931
    %v935 = vmul.f32 %v934, %v933
    %v936 = vmul.f32 0.5, %v935
    %v937 = vsub.f32 1.5, %v936
    %v938 = vmul.f32 %v933, %v937
    %vm939 = vweird.f32 %v931
    %vm940 = vweird.f32 %v933
    %vm941 = vmor %vm939, %vm940
    %v942 = vsel %vm941, %v933, %v938
    %v943 = vrsqrt.pop %v932
    %v944 = vmul.f32 %v943, %v932
    %v945 = vmul.f32 %v944, %v943
    %v946 = vmul.f32 0.5, %v945
    %v947 = vsub.f32 1.5, %v946
    %v948 = vmul.f32 %v943, %v947
    %vm949 = vweird.f32 %v932
    %vm950 = vweird.f32 %v943
    %vm951 = vmor %vm949, %vm950
    %v952 = vsel %vm951, %v943, %v948
    %v953 = vmul.f32 %v921, %v942
    %v954 = vmul.f32 %v922, %v952
    %v956 = vperm.slane %v913, 0
    %v958 = vmul.f32 %v953, %v956
    %v959 = vmul.f32 %v954, %v956
    %v961 = vperm.slane %v914, 0
    %v963 = vadd.f32 %v958, %v961
    %v964 = vadd.f32 %v959, %v961
    %v965 = vld [vmem:[%s14] sm:$0x3]
    %v967 = vperm.slane %v965, 0
    %v968 = vperm.slane %v965, 1
    %v971 = vmul.f32 %v963, %v967
    %v972 = vmul.f32 %v964, %v968
    %v973 = vadd.f32 %v971, %v972
    %974 = vadd.xlane.f32.xlu0 %v973
    %v975 = vpop.xlane.xlu0 %974
    %v976 = vld [vmem:[#allocation2] sm:$0x1]
    %v978 = vperm.slane %v976, 0
    %v980 = vadd.f32 %v975, %v978
    %vm981 = vcmask 7168
    %982 = vst.msk [vmem:[%s16] sm:$0xff] %vm981, %v980
    // Predicated region
    $region82: #{transam_forward.1} parent=1 // pred_check
      _
    $region83: #{transam_forward.1} parent=1 // pred_check_branch
      %984 = sbr.rel (0) target = $region85
    $region84: #{transam_forward.1} parent=1 // pred_region
      _
    $region85: #{transam_forward.1} parent=1 // pred_fallthru
      _
    // Predicated region
    $region86: #{transam_forward.1} parent=1 // pred_check
      _
    $region87: #{transam_forward.1} parent=1 // pred_check_branch
      %986 = sbr.rel (0) target = $region89
    $region88: #{transam_forward.1} parent=1 // pred_region
      _
    $region89: #{transam_forward.1} parent=1 // pred_fallthru
      _
    %987 = vsyncpa [#allocation4], 1
    %988 = vsyncpa [#allocation6], 1
    %989 = vsyncpa [#allocation9], 1

</llo_original>
